<compile_context>
chip_gen: v7x
topology: tpu7x:2x2x1
jax: 0.10.0
libtpu: 0.0.40
codegen_flags: <defaults>
</compile_context>

<pallas_src>
import jax
import jax.numpy as jnp
from jax import lax
from jax.experimental import pallas as pl
from jax.experimental.pallas import tpu as pltpu

EPS = 1e-5      # PyTorch BatchNorm2d default eps
LANE = 128      # channel / K dims padded to a multiple of the TPU lane width
NCORES = 2      # leading "parallel" grid axis (megacore split on v7x)


def _round_up(x, m):
    return (x + m - 1) // m * m


def _pad2d(a, rows, cols):
    r, c = a.shape
    return jnp.pad(a, ((0, rows - r), (0, cols - c)))


def _vmem_limit(est_bytes):
    # Explicit scoped-VMEM limit: above v5e's 16 MiB default, below v7x's 64 MiB chip.
    return int(min(64 << 20, max(32 << 20, est_bytes + (8 << 20))))


def _plan_rows(m, per_row_bytes, fixed_bytes, budget=12 << 20):
    """Pick (tm, n_inner, Mp): biggest row tile whose double-buffered footprint
    plus resident weights fits a conservative VMEM budget (portable v5e..v7x)."""
    tm = 512
    while tm > 64 and tm * per_row_bytes + fixed_bytes > budget:
        tm //= 2
    share = _round_up(-(-m // NCORES), 64)       # rows per TensorCore, rounded
    tm = max(64, min(tm, share))
    n_inner = -(-m // (NCORES * tm))
    mp = NCORES * n_inner * tm
    return tm, n_inner, mp


# ---------------------------------------------------------------------------
# Pallas kernels
# ---------------------------------------------------------------------------
def _matmul_stats_kernel(x_ref, w_ref, y_ref, s_ref, sq_ref):
    """Conv-as-matmul per row tile; bf16 store; f32 per-channel sum / sum-sq."""
    y = jnp.dot(x_ref[...], w_ref[...], preferred_element_type=jnp.float32)
    y_ref[...] = y.astype(y_ref.dtype)
    s = jnp.sum(y, axis=0, keepdims=True)[None]          # (1, 1, Cp)
    sq = jnp.sum(y * y, axis=0, keepdims=True)[None]

    @pl.when(pl.program_id(1) == 0)
    def _init():
        s_ref[...] = s
        sq_ref[...] = sq

    @pl.when(pl.program_id(1) != 0)
    def _accum():
        s_ref[...] = s_ref[...] + s
        sq_ref[...] = sq_ref[...] + sq


def _matmul2_stats_kernel(x_ref, xs_ref, w_ref, wsc_ref,
                          y_ref, sc_ref, ys_ref, ysq_ref, ss_ref, ssq_ref):
    """conv2 matmul fused with the 1x1 projection-shortcut matmul (+ stats)."""
    y = jnp.dot(x_ref[...], w_ref[...], preferred_element_type=jnp.float32)
    sc = jnp.dot(xs_ref[...], wsc_ref[...], preferred_element_type=jnp.float32)
    y_ref[...] = y.astype(y_ref.dtype)
    sc_ref[...] = sc.astype(sc_ref.dtype)
    ys = jnp.sum(y, axis=0, keepdims=True)[None]
    ysq = jnp.sum(y * y, axis=0, keepdims=True)[None]
    ss = jnp.sum(sc, axis=0, keepdims=True)[None]
    ssq = jnp.sum(sc * sc, axis=0, keepdims=True)[None]

    @pl.when(pl.program_id(1) == 0)
    def _init():
        ys_ref[...] = ys
        ysq_ref[...] = ysq
        ss_ref[...] = ss
        ssq_ref[...] = ssq

    @pl.when(pl.program_id(1) != 0)
    def _accum():
        ys_ref[...] = ys_ref[...] + ys
        ysq_ref[...] = ysq_ref[...] + ysq
        ss_ref[...] = ss_ref[...] + ss
        ssq_ref[...] = ssq_ref[...] + ssq


def _scale_shift_relu_kernel(y_ref, s_ref, t_ref, o_ref):
    """Folded BN (y*s + t) + ReLU; bf16 in, bf16 out (feeds the next matmul)."""
    y = y_ref[...].astype(jnp.float32) * s_ref[...] + t_ref[...]
    o_ref[...] = jnp.maximum(y, 0.0).astype(o_ref.dtype)


def _bn_add_relu_kernel(y_ref, sc_ref, s_ref, t_ref, ssc_ref, tsc_ref, o_ref):
    """Folded BN(main) + folded BN(proj shortcut) + residual add + ReLU."""
    y = y_ref[...].astype(jnp.float32) * s_ref[...] + t_ref[...]
    sc = sc_ref[...].astype(jnp.float32) * ssc_ref[...] + tsc_ref[...]
    o_ref[...] = jnp.maximum(y + sc, 0.0).astype(o_ref.dtype)


def _bn_add_relu_id_kernel(y_ref, sc_ref, s_ref, t_ref, o_ref):
    """Identity-shortcut specialization: folded BN(main) + x + ReLU."""
    y = y_ref[...].astype(jnp.float32) * s_ref[...] + t_ref[...]
    o_ref[...] = jnp.maximum(y + sc_ref[...].astype(jnp.float32), 0.0).astype(o_ref.dtype)


# ---------------------------------------------------------------------------
# pallas_call wrappers
# ---------------------------------------------------------------------------
def matmul_stats(x2d, w2d, tm, n_inner):
    mp, k = x2d.shape
    cp = w2d.shape[1]
    est = tm * (4 * k + 4 * cp) + 2 * k * cp
    return pl.pallas_call(
        _matmul_stats_kernel,
        out_shape=(jax.ShapeDtypeStruct((mp, cp), jnp.bfloat16),
                   jax.ShapeDtypeStruct((NCORES, 1, cp), jnp.float32),
                   jax.ShapeDtypeStruct((NCORES, 1, cp), jnp.float32)),
        grid=(NCORES, n_inner),
        in_specs=[pl.BlockSpec((tm, k), lambda p, i: (p * n_inner + i, 0)),
                  pl.BlockSpec((k, cp), lambda p, i: (0, 0))],
        out_specs=(pl.BlockSpec((tm, cp), lambda p, i: (p * n_inner + i, 0)),
                   pl.BlockSpec((1, 1, cp), lambda p, i: (p, 0, 0)),
                   pl.BlockSpec((1, 1, cp), lambda p, i: (p, 0, 0))),
        compiler_params=pltpu.CompilerParams(
            dimension_semantics=("parallel", "arbitrary"),
            vmem_limit_bytes=_vmem_limit(est)),
    )(x2d, w2d)


def matmul2_stats(x2d, xs2d, w2d, wsc2d, tm, n_inner):
    mp, k = x2d.shape
    ksc = xs2d.shape[1]
    cp = w2d.shape[1]
    est = tm * (4 * k + 4 * ksc + 8 * cp) + 2 * (k + ksc) * cp
    stat = jax.ShapeDtypeStruct((NCORES, 1, cp), jnp.float32)
    stat_spec = pl.BlockSpec((1, 1, cp), lambda p, i: (p, 0, 0))
    row_out = pl.BlockSpec((tm, cp), lambda p, i: (p * n_inner + i, 0))
    return pl.pallas_call(
        _matmul2_stats_kernel,
        out_shape=(jax.ShapeDtypeStruct((mp, cp), jnp.bfloat16),
                   jax.ShapeDtypeStruct((mp, cp), jnp.bfloat16),
                   stat, stat, stat, stat),
        grid=(NCORES, n_inner),
        in_specs=[pl.BlockSpec((tm, k), lambda p, i: (p * n_inner + i, 0)),
                  pl.BlockSpec((tm, ksc), lambda p, i: (p * n_inner + i, 0)),
                  pl.BlockSpec((k, cp), lambda p, i: (0, 0)),
                  pl.BlockSpec((ksc, cp), lambda p, i: (0, 0))],
        out_specs=(row_out, row_out, stat_spec, stat_spec, stat_spec, stat_spec),
        compiler_params=pltpu.CompilerParams(
            dimension_semantics=("parallel", "arbitrary"),
            vmem_limit_bytes=_vmem_limit(est)),
    )(x2d, xs2d, w2d, wsc2d)


def apply_scale_shift_relu(y, s, t, tm):
    mp, cp = y.shape
    return pl.pallas_call(
        _scale_shift_relu_kernel,
        out_shape=jax.ShapeDtypeStruct((mp, cp), jnp.bfloat16),
        grid=(mp // tm,),
        in_specs=[pl.BlockSpec((tm, cp), lambda i: (i, 0)),
                  pl.BlockSpec((1, cp), lambda i: (0, 0)),
                  pl.BlockSpec((1, cp), lambda i: (0, 0))],
        out_specs=pl.BlockSpec((tm, cp), lambda i: (i, 0)),
        compiler_params=pltpu.CompilerParams(
            dimension_semantics=("parallel",),
            vmem_limit_bytes=_vmem_limit(tm * 8 * cp)),
    )(y, s, t)


def apply_bn_add_relu(y, sc, s, t, ssc, tsc, tm):
    mp, cp = y.shape
    return pl.pallas_call(
        _bn_add_relu_kernel,
        out_shape=jax.ShapeDtypeStruct((mp, cp), jnp.float32),
        grid=(mp // tm,),
        in_specs=[pl.BlockSpec((tm, cp), lambda i: (i, 0)),
                  pl.BlockSpec((tm, cp), lambda i: (i, 0)),
                  pl.BlockSpec((1, cp), lambda i: (0, 0)),
                  pl.BlockSpec((1, cp), lambda i: (0, 0)),
                  pl.BlockSpec((1, cp), lambda i: (0, 0)),
                  pl.BlockSpec((1, cp), lambda i: (0, 0))],
        out_specs=pl.BlockSpec((tm, cp), lambda i: (i, 0)),
        compiler_params=pltpu.CompilerParams(
            dimension_semantics=("parallel",),
            vmem_limit_bytes=_vmem_limit(tm * 16 * cp)),
    )(y, sc, s, t, ssc, tsc)


def apply_bn_add_relu_id(y, sc, s, t, tm):
    mp, cp = y.shape
    return pl.pallas_call(
        _bn_add_relu_id_kernel,
        out_shape=jax.ShapeDtypeStruct((mp, cp), jnp.float32),
        grid=(mp // tm,),
        in_specs=[pl.BlockSpec((tm, cp), lambda i: (i, 0)),
                  pl.BlockSpec((tm, cp), lambda i: (i, 0)),
                  pl.BlockSpec((1, cp), lambda i: (0, 0)),
                  pl.BlockSpec((1, cp), lambda i: (0, 0))],
        out_specs=pl.BlockSpec((tm, cp), lambda i: (i, 0)),
        compiler_params=pltpu.CompilerParams(
            dimension_semantics=("parallel",),
            vmem_limit_bytes=_vmem_limit(tm * 16 * cp)),
    )(y, sc, s, t)


# ---------------------------------------------------------------------------
# Glue: im2col / weight reshaping / BN folding
# ---------------------------------------------------------------------------
def im2col_3x3(x_nhwc, stride):
    N, H, W, C = x_nhwc.shape
    s = stride
    Ho = (H + 2 - 3) // s + 1
    Wo = (W + 2 - 3) // s + 1
    xp = jnp.pad(x_nhwc, ((0, 0), (1, 1), (1, 1), (0, 0)))
    cols = []
    for dh in range(3):
        for dw in range(3):
            cols.append(xp[:, dh:dh + (Ho - 1) * s + 1:s,
                            dw:dw + (Wo - 1) * s + 1:s, :])
    patches = jnp.concatenate(cols, axis=-1)          # (N, Ho, Wo, 9*C)
    return patches.reshape(N * Ho * Wo, 9 * C), Ho, Wo


def w3x3_to_mat(w_oihw):
    # (Cout, Cin, 3, 3) -> (9*Cin, Cout), matching im2col ordering (dh, dw, cin)
    cout, cin = w_oihw.shape[0], w_oihw.shape[1]
    return jnp.transpose(w_oihw, (2, 3, 1, 0)).reshape(9 * cin, cout)


def fold_bn(ssum, ssq, gp, bp, m_real):
    """Reduce per-core partial stats and fold batch stats + affine params into
    per-channel scale/shift (f32, (1, Cp))."""
    ssum = jnp.sum(ssum, axis=0)                      # (1, Cp)
    ssq = jnp.sum(ssq, axis=0)
    mean = ssum / m_real
    var = jnp.maximum(ssq / m_real - mean * mean, 0.0)
    s = gp * lax.rsqrt(var + EPS)
    t = bp - mean * s
    return s, t


def make_res_block(params, stride):
    """Hoists weight repacking / padding out of the per-forward path and returns
    a jitted NCHW->NCHW forward closure."""
    cout, cin = params["w1"].shape[0], params["w1"].shape[1]
    has_proj = params["w_sc"] is not None
    cp = _round_up(cout, LANE)
    k1p = _round_up(9 * cin, LANE)
    k2p = _round_up(9 * cout, LANE)
    kscp = _round_up(cin, LANE) if has_proj else 0

    w1m = _pad2d(w3x3_to_mat(params["w1"]), k1p, cp).astype(jnp.bfloat16)
    w2m = _pad2d(w3x3_to_mat(params["w2"]), k2p, cp).astype(jnp.bfloat16)
    g1 = _pad2d(params["g1"].astype(jnp.float32).reshape(1, -1), 1, cp)
    b1 = _pad2d(params["b1"].astype(jnp.float32).reshape(1, -1), 1, cp)
    g2 = _pad2d(params["g2"].astype(jnp.float32).reshape(1, -1), 1, cp)
    b2 = _pad2d(params["b2"].astype(jnp.float32).reshape(1, -1), 1, cp)
    if has_proj:
        wscm = _pad2d(jnp.transpose(params["w_sc"], (2, 3, 1, 0)).reshape(cin, cout),
                      kscp, cp).astype(jnp.bfloat16)
        gsc = _pad2d(params["g_sc"].astype(jnp.float32).reshape(1, -1), 1, cp)
        bsc = _pad2d(params["b_sc"].astype(jnp.float32).reshape(1, -1), 1, cp)

    @jax.jit
    def fwd(x_nchw):
        x = jnp.transpose(x_nchw, (0, 2, 3, 1)).astype(jnp.bfloat16)   # NHWC, bf16
        N = x.shape[0]

        # ---- conv1 (3x3, stride) + BN1 + ReLU ----
        p1, Ho, Wo = im2col_3x3(x, stride)             # (M, 9*Cin) bf16
        M = N * Ho * Wo
        per_row = max(4 * k1p + 4 * cp, 4 * k2p + 4 * kscp + 8 * cp)
        fixed = 2 * (k2p + kscp) * cp
        tm, n_inner, Mp = _plan_rows(M, per_row, fixed)

        p1p = _pad2d(p1, Mp, k1p)
        y1_raw, s1sum, s1sq = matmul_stats(p1p, w1m, tm, n_inner)
        s1, t1 = fold_bn(s1sum, s1sq, g1, b1, M)
        y1_act = apply_scale_shift_relu(y1_raw, s1, t1, tm)            # (Mp, Cp) bf16
        y1_nhwc = y1_act[:M, :cout].reshape(N, Ho, Wo, cout)

        # ---- conv2 (3x3, s=1) + BN2, shortcut, residual add, ReLU ----
        p2, _, _ = im2col_3x3(y1_nhwc, 1)              # (M, 9*Cout) bf16
        p2p = _pad2d(p2, Mp, k2p)

        if has_proj:
            xs = x[:, ::stride, ::stride, :].reshape(M, cin)
            xsp = _pad2d(xs, Mp, kscp)
            y2_raw, sc_raw, ysum, ysq, scsum, scsq = matmul2_stats(
                p2p, xsp, w2m, wscm, tm, n_inner)
            s2, t2 = fold_bn(ysum, ysq, g2, b2, M)
            ssc, tsc = fold_bn(scsum, scsq, gsc, bsc, M)
            out2d = apply_bn_add_relu(y2_raw, sc_raw, s2, t2, ssc, tsc, tm)
        else:
            y2_raw, ysum, ysq = matmul_stats(p2p, w2m, tm, n_inner)
            s2, t2 = fold_bn(ysum, ysq, g2, b2, M)
            sc_raw = _pad2d(x.reshape(M, cin), Mp, cp)                  # bf16 passthrough
            out2d = apply_bn_add_relu_id(y2_raw, sc_raw, s2, t2, tm)

        out = out2d[:M, :cout].reshape(N, Ho, Wo, cout).astype(jnp.float32)
        return jnp.transpose(out, (0, 3, 1, 2))        # back to NCHW

    return fwd


# ---------------------------------------------------------------------------
# Pure-JAX reference (emulates the bf16 rounding of matmul inputs; f32 elsewhere)
# ---------------------------------------------------------------------------
def _q(a):
    return a.astype(jnp.bfloat16).astype(jnp.float32)


def _ref_conv(x_nhwc, w_oihw, stride, padding):
    w = jnp.transpose(w_oihw, (2, 3, 1, 0))  # HWIO
    return lax.conv_general_dilated(
        x_nhwc, w, (stride, stride), padding,
        dimension_numbers=("NHWC", "HWIO", "NHWC"))


def _ref_bn(y, gamma, beta):
    mean = y.mean(axis=(0, 1, 2), keepdims=True)
    var = jnp.square(y - mean).mean(axis=(0, 1, 2), keepdims=True)
    return (y - mean) * lax.rsqrt(var + EPS) * gamma + beta


def ref_forward(x_nchw, params, stride):
    x = jnp.transpose(x_nchw, (0, 2, 3, 1)).astype(jnp.float32)
    y = _ref_conv(_q(x), _q(params["w1"]), stride, [(1, 1), (1, 1)])
    y = jnp.maximum(_ref_bn(y, params["g1"], params["b1"]), 0.0)
    y = _ref_conv(_q(y), _q(params["w2"]), 1, [(1, 1), (1, 1)])
    y = _ref_bn(y, params["g2"], params["b2"])
    if params["w_sc"] is not None:
        sc = _ref_conv(_q(x), _q(params["w_sc"]), stride, [(0, 0), (0, 0)])
        sc = _ref_bn(sc, params["g_sc"], params["b_sc"])
    else:
        sc = x
    out = jnp.maximum(y + sc, 0.0)
    return jnp.transpose(out, (0, 3, 1, 2))


# ---------------------------------------------------------------------------
if __name__ == "__main__":
    def make_params(key, cin, cout, projection):
        ks = jax.random.split(key, 9)
        return {
            "w1": 0.1 * jax.random.normal(ks[0], (cout, cin, 3, 3), jnp.float32),
            "g1": 1.0 + 0.1 * jax.random.normal(ks[1], (cout,), jnp.float32),
            "b1": 0.1 * jax.random.normal(ks[2], (cout,), jnp.float32),
            "w2": 0.1 * jax.random.normal(ks[3], (cout, cout, 3, 3), jnp.float32),
            "g2": 1.0 + 0.1 * jax.random.normal(ks[4], (cout,), jnp.float32),
            "b2": 0.1 * jax.random.normal(ks[5], (cout,), jnp.float32),
            "w_sc": (0.1 * jax.random.normal(ks[6], (cout, cin, 1, 1), jnp.float32)
                     if projection else None),
            "g_sc": 1.0 + 0.1 * jax.random.normal(ks[7], (cout,), jnp.float32),
            "b_sc": 0.1 * jax.random.normal(ks[8], (cout,), jnp.float32),
        }

    key = jax.random.PRNGKey(0)
    k1, k2, k3, k4 = jax.random.split(key, 4)

    # Case 1: projection shortcut — ResBlock(4, 8, stride=2), x: (2, 4, 16, 16)
    params1 = make_params(k1, 4, 8, True)
    x1 = jax.random.normal(k2, (2, 4, 16, 16), jnp.float32)
    fwd1 = make_res_block(params1, 2)
    out1 = jax.block_until_ready(fwd1(x1))
    ref1 = jax.block_until_ready(ref_forward(x1, params1, 2))
    assert out1.shape == (2, 8, 8, 8), out1.shape
    assert jnp.allclose(out1, ref1, rtol=3e-2, atol=3e-2), \
        float(jnp.abs(out1 - ref1).max())

    # Case 2: identity shortcut — ResBlock(8, 8, stride=1), x: (8, 8, 16, 16)
    # (M = 2048 rows -> grid (2 parallel, 2 arbitrary): exercises both the per-core
    # split and the cross-tile BN-stats accumulation)
    params2 = make_params(k3, 8, 8, False)
    x2 = jax.random.normal(k4, (8, 8, 16, 16), jnp.float32)
    fwd2 = make_res_block(params2, 1)
    out2 = jax.block_until_ready(fwd2(x2))
    ref2 = jax.block_until_ready(ref_forward(x2, params2, 1))
    assert out2.shape == (8, 8, 16, 16), out2.shape
    assert jnp.allclose(out2, ref2, rtol=3e-2, atol=3e-2), \
        float(jnp.abs(out2 - ref2).max())

    print("KERNEL_OK")
</pallas_src>

<mosaic_0001>
module attributes {stable_mosaic.version = 11 : i64} {
  func.func @_matmul_stats_kernel(%arg0: i32, %arg1: i32, %arg2: memref<64x128xbf16, #tpu.memory_space<vmem>>, %arg3: memref<128x128xbf16, #tpu.memory_space<vmem>>, %arg4: memref<64x128xbf16, #tpu.memory_space<vmem>>, %arg5: memref<1x1x128xf32, #tpu.memory_space<vmem>>, %arg6: memref<1x1x128xf32, #tpu.memory_space<vmem>>) attributes {dimension_semantics = [#tpu.dimension_semantics<parallel>, #tpu.dimension_semantics<arbitrary>], iteration_bounds = array<i64: 2, 1>, scalar_prefetch = 0 : i64, scratch_operands = 0 : i64, tpu.core_type = #tpu.core_type<tc>, window_params = [{transform_indices = @transform_0, window_bounds = array<i64: 64, 128>}, {pipeline_mode = #tpu.pipeline_mode<synchronous>, transform_indices = @transform_1, window_bounds = array<i64: 128, 128>}, {transform_indices = @transform_2, window_bounds = array<i64: 64, 128>}, {transform_indices = @transform_3, window_bounds = array<i64: 1, 1, 128>}, {transform_indices = @transform_4, window_bounds = array<i64: 1, 1, 128>}]} {
    %c0 = arith.constant 0 : index
    %c0_0 = arith.constant 0 : index
    %0 = vector.load %arg2[%c0, %c0_0] : memref<64x128xbf16, #tpu.memory_space<vmem>>, vector<64x128xbf16>
    %c0_1 = arith.constant 0 : index
    %c0_2 = arith.constant 0 : index
    %1 = vector.load %arg3[%c0_1, %c0_2] : memref<128x128xbf16, #tpu.memory_space<vmem>>, vector<128x128xbf16>
    %cst = arith.constant dense<0.000000e+00> : vector<64x128xf32>
    %2 = tpu.matmul %0, %1, %cst {dimension_numbers = #tpu.dot_dimension_numbers<[1], [0], [0], [1], [0, 0, 1, 1], [], []>} : vector<64x128xbf16>, vector<128x128xbf16>, vector<64x128xf32> -> vector<64x128xf32>
    %3 = arith.truncf %2 : vector<64x128xf32> to vector<64x128xbf16>
    %c0_3 = arith.constant 0 : index
    %c0_4 = arith.constant 0 : index
    %4 = vector.load %arg4[%c0_3, %c0_4] : memref<64x128xbf16, #tpu.memory_space<vmem>>, vector<64x128xbf16>
    tpu.vector_store %arg4[%c0_3, %c0_4], %3 {strides = array<i32>} : memref<64x128xbf16, #tpu.memory_space<vmem>>, vector<64x128xbf16>,
    %cst_5 = arith.constant dense<0.000000e+00> : vector<128xf32>
    %5 = vector.multi_reduction <add>, %2, %cst_5 [0] : vector<64x128xf32> to vector<128xf32>
    %6 = vector.shape_cast %5 : vector<128xf32> to vector<1x128xf32>
    %7 = vector.shape_cast %6 : vector<1x128xf32> to vector<1x1x128xf32>
    %8 = arith.mulf %2, %2 : vector<64x128xf32>
    %cst_6 = arith.constant dense<0.000000e+00> : vector<128xf32>
    %9 = vector.multi_reduction <add>, %8, %cst_6 [0] : vector<64x128xf32> to vector<128xf32>
    %10 = vector.shape_cast %9 : vector<128xf32> to vector<1x128xf32>
    %11 = vector.shape_cast %10 : vector<1x128xf32> to vector<1x1x128xf32>
    %c0_i32 = arith.constant 0 : i32
    %12 = arith.cmpi eq, %arg1, %c0_i32 : i32
    %13 = arith.extui %12 : i1 to i32
    %c0_i32_7 = arith.constant 0 : i32
    %14 = arith.cmpi ne, %13, %c0_i32_7 : i32
    scf.if %14 {
      %c0_10 = arith.constant 0 : index
      %c0_11 = arith.constant 0 : index
      %c0_12 = arith.constant 0 : index
      %18 = vector.load %arg5[%c0_10, %c0_11, %c0_12] : memref<1x1x128xf32, #tpu.memory_space<vmem>>, vector<1x1x128xf32>
      tpu.vector_store %arg5[%c0_10, %c0_11, %c0_12], %7 {strides = array<i32>} : memref<1x1x128xf32, #tpu.memory_space<vmem>>, vector<1x1x128xf32>,
      %c0_13 = arith.constant 0 : index
      %c0_14 = arith.constant 0 : index
      %c0_15 = arith.constant 0 : index
      %19 = vector.load %arg6[%c0_13, %c0_14, %c0_15] : memref<1x1x128xf32, #tpu.memory_space<vmem>>, vector<1x1x128xf32>
      tpu.vector_store %arg6[%c0_13, %c0_14, %c0_15], %11 {strides = array<i32>} : memref<1x1x128xf32, #tpu.memory_space<vmem>>, vector<1x1x128xf32>,
    } else {
    }
    %c0_i32_8 = arith.constant 0 : i32
    %15 = arith.cmpi ne, %arg1, %c0_i32_8 : i32
    %16 = arith.extui %15 : i1 to i32
    %c0_i32_9 = arith.constant 0 : i32
    %17 = arith.cmpi ne, %16, %c0_i32_9 : i32
    scf.if %17 {
      %c0_10 = arith.constant 0 : index
      %c0_11 = arith.constant 0 : index
      %c0_12 = arith.constant 0 : index
      %18 = vector.load %arg5[%c0_10, %c0_11, %c0_12] : memref<1x1x128xf32, #tpu.memory_space<vmem>>, vector<1x1x128xf32>
      %19 = arith.addf %18, %7 : vector<1x1x128xf32>
      %c0_13 = arith.constant 0 : index
      %c0_14 = arith.constant 0 : index
      %c0_15 = arith.constant 0 : index
      %20 = vector.load %arg5[%c0_13, %c0_14, %c0_15] : memref<1x1x128xf32, #tpu.memory_space<vmem>>, vector<1x1x128xf32>
      tpu.vector_store %arg5[%c0_13, %c0_14, %c0_15], %19 {strides = array<i32>} : memref<1x1x128xf32, #tpu.memory_space<vmem>>, vector<1x1x128xf32>,
      %c0_16 = arith.constant 0 : index
      %c0_17 = arith.constant 0 : index
      %c0_18 = arith.constant 0 : index
      %21 = vector.load %arg6[%c0_16, %c0_17, %c0_18] : memref<1x1x128xf32, #tpu.memory_space<vmem>>, vector<1x1x128xf32>
      %22 = arith.addf %21, %11 : vector<1x1x128xf32>
      %c0_19 = arith.constant 0 : index
      %c0_20 = arith.constant 0 : index
      %c0_21 = arith.constant 0 : index
      %23 = vector.load %arg6[%c0_19, %c0_20, %c0_21] : memref<1x1x128xf32, #tpu.memory_space<vmem>>, vector<1x1x128xf32>
      tpu.vector_store %arg6[%c0_19, %c0_20, %c0_21], %22 {strides = array<i32>} : memref<1x1x128xf32, #tpu.memory_space<vmem>>, vector<1x1x128xf32>,
    } else {
    }
    return
  }
  func.func @transform_0(%arg0: i32, %arg1: i32) -> (i32, i32) {
    %c1_i32 = arith.constant 1 : i32
    %0 = arith.muli %arg0, %c1_i32 : i32
    %1 = arith.addi %0, %arg1 : i32
    %c0_i32 = arith.constant 0 : i32
    %c0_i32_0 = arith.constant 0 : i32
    return %1, %c0_i32 : i32, i32
  }
  func.func @transform_1(%arg0: i32, %arg1: i32) -> (i32, i32) {
    %c0_i32 = arith.constant 0 : i32
    %c0_i32_0 = arith.constant 0 : i32
    %c0_i32_1 = arith.constant 0 : i32
    return %c0_i32, %c0_i32_0 : i32, i32
  }
  func.func @transform_2(%arg0: i32, %arg1: i32) -> (i32, i32) {
    %c1_i32 = arith.constant 1 : i32
    %0 = arith.muli %arg0, %c1_i32 : i32
    %1 = arith.addi %0, %arg1 : i32
    %c0_i32 = arith.constant 0 : i32
    %c0_i32_0 = arith.constant 0 : i32
    return %1, %c0_i32 : i32, i32
  }
  func.func @transform_3(%arg0: i32, %arg1: i32) -> (i32, i32, i32) {
    %c0_i32 = arith.constant 0 : i32
    %c0_i32_0 = arith.constant 0 : i32
    %c0_i32_1 = arith.constant 0 : i32
    return %arg0, %c0_i32, %c0_i32_0 : i32, i32, i32
  }
  func.func @transform_4(%arg0: i32, %arg1: i32) -> (i32, i32, i32) {
    %c0_i32 = arith.constant 0 : i32
    %c0_i32_0 = arith.constant 0 : i32
    %c0_i32_1 = arith.constant 0 : i32
    return %arg0, %c0_i32, %c0_i32_0 : i32, i32, i32
  }
}

module attributes {stable_mosaic.version = 11 : i64} {
  func.func @_scale_shift_relu_kernel(%arg0: i32, %arg1: memref<64x128xbf16, #tpu.memory_space<vmem>>, %arg2: memref<1x128xf32, #tpu.memory_space<vmem>>, %arg3: memref<1x128xf32, #tpu.memory_space<vmem>>, %arg4: memref<64x128xbf16, #tpu.memory_space<vmem>>) attributes {dimension_semantics = [#tpu.dimension_semantics<parallel>], iteration_bounds = array<i64: 2>, scalar_prefetch = 0 : i64, scratch_operands = 0 : i64, tpu.core_type = #tpu.core_type<tc>, window_params = [{transform_indices = @transform_0, window_bounds = array<i64: 64, 128>}, {pipeline_mode = #tpu.pipeline_mode<synchronous>, transform_indices = @transform_1, window_bounds = array<i64: 1, 128>}, {pipeline_mode = #tpu.pipeline_mode<synchronous>, transform_indices = @transform_2, window_bounds = array<i64: 1, 128>}, {transform_indices = @transform_3, window_bounds = array<i64: 64, 128>}]} {
    %c0 = arith.constant 0 : index
    %c0_0 = arith.constant 0 : index
    %0 = vector.load %arg1[%c0, %c0_0] : memref<64x128xbf16, #tpu.memory_space<vmem>>, vector<64x128xbf16>
    %1 = arith.extf %0 : vector<64x128xbf16> to vector<64x128xf32>
    %c0_1 = arith.constant 0 : index
    %c0_2 = arith.constant 0 : index
    %2 = vector.load %arg2[%c0_1, %c0_2] : memref<1x128xf32, #tpu.memory_space<vmem>>, vector<1x128xf32>
    %3 = vector.broadcast %2 : vector<1x128xf32> to vector<64x128xf32>
    %4 = arith.mulf %1, %3 : vector<64x128xf32>
    %c0_3 = arith.constant 0 : index
    %c0_4 = arith.constant 0 : index
    %5 = vector.load %arg3[%c0_3, %c0_4] : memref<1x128xf32, #tpu.memory_space<vmem>>, vector<1x128xf32>
    %6 = vector.broadcast %5 : vector<1x128xf32> to vector<64x128xf32>
    %7 = arith.addf %4, %6 : vector<64x128xf32>
    %cst = arith.constant 0.000000e+00 : f32
    %8 = vector.broadcast %cst : f32 to vector<64x128xf32>
    %9 = arith.maximumf %7, %8 : vector<64x128xf32>
    %10 = arith.truncf %9 : vector<64x128xf32> to vector<64x128xbf16>
    %c0_5 = arith.constant 0 : index
    %c0_6 = arith.constant 0 : index
    %11 = vector.load %arg4[%c0_5, %c0_6] : memref<64x128xbf16, #tpu.memory_space<vmem>>, vector<64x128xbf16>
    tpu.vector_store %arg4[%c0_5, %c0_6], %10 {strides = array<i32>} : memref<64x128xbf16, #tpu.memory_space<vmem>>, vector<64x128xbf16>,
    return
  }
  func.func @transform_0(%arg0: i32) -> (i32, i32) {
    %c0_i32 = arith.constant 0 : i32
    %c0_i32_0 = arith.constant 0 : i32
    return %arg0, %c0_i32 : i32, i32
  }
  func.func @transform_1(%arg0: i32) -> (i32, i32) {
    %c0_i32 = arith.constant 0 : i32
    %c0_i32_0 = arith.constant 0 : i32
    %c0_i32_1 = arith.constant 0 : i32
    return %c0_i32, %c0_i32_0 : i32, i32
  }
  func.func @transform_2(%arg0: i32) -> (i32, i32) {
    %c0_i32 = arith.constant 0 : i32
    %c0_i32_0 = arith.constant 0 : i32
    %c0_i32_1 = arith.constant 0 : i32
    return %c0_i32, %c0_i32_0 : i32, i32
  }
  func.func @transform_3(%arg0: i32) -> (i32, i32) {
    %c0_i32 = arith.constant 0 : i32
    %c0_i32_0 = arith.constant 0 : i32
    return %arg0, %c0_i32 : i32, i32
  }
}

module attributes {stable_mosaic.version = 11 : i64} {
  func.func @_matmul2_stats_kernel(%arg0: i32, %arg1: i32, %arg2: memref<64x128xbf16, #tpu.memory_space<vmem>>, %arg3: memref<64x128xbf16, #tpu.memory_space<vmem>>, %arg4: memref<128x128xbf16, #tpu.memory_space<vmem>>, %arg5: memref<128x128xbf16, #tpu.memory_space<vmem>>, %arg6: memref<64x128xbf16, #tpu.memory_space<vmem>>, %arg7: memref<64x128xbf16, #tpu.memory_space<vmem>>, %arg8: memref<1x1x128xf32, #tpu.memory_space<vmem>>, %arg9: memref<1x1x128xf32, #tpu.memory_space<vmem>>, %arg10: memref<1x1x128xf32, #tpu.memory_space<vmem>>, %arg11: memref<1x1x128xf32, #tpu.memory_space<vmem>>) attributes {dimension_semantics = [#tpu.dimension_semantics<parallel>, #tpu.dimension_semantics<arbitrary>], iteration_bounds = array<i64: 2, 1>, scalar_prefetch = 0 : i64, scratch_operands = 0 : i64, tpu.core_type = #tpu.core_type<tc>, window_params = [{transform_indices = @transform_0, window_bounds = array<i64: 64, 128>}, {transform_indices = @transform_1, window_bounds = array<i64: 64, 128>}, {pipeline_mode = #tpu.pipeline_mode<synchronous>, transform_indices = @transform_2, window_bounds = array<i64: 128, 128>}, {pipeline_mode = #tpu.pipeline_mode<synchronous>, transform_indices = @transform_3, window_bounds = array<i64: 128, 128>}, {transform_indices = @transform_4, window_bounds = array<i64: 64, 128>}, {transform_indices = @transform_5, window_bounds = array<i64: 64, 128>}, {transform_indices = @transform_6, window_bounds = array<i64: 1, 1, 128>}, {transform_indices = @transform_7, window_bounds = array<i64: 1, 1, 128>}, {transform_indices = @transform_8, window_bounds = array<i64: 1, 1, 128>}, {transform_indices = @transform_9, window_bounds = array<i64: 1, 1, 128>}]} {
    %c0 = arith.constant 0 : index
    %c0_0 = arith.constant 0 : index
    %0 = vector.load %arg2[%c0, %c0_0] : memref<64x128xbf16, #tpu.memory_space<vmem>>, vector<64x128xbf16>
    %c0_1 = arith.constant 0 : index
    %c0_2 = arith.constant 0 : index
    %1 = vector.load %arg4[%c0_1, %c0_2] : memref<128x128xbf16, #tpu.memory_space<vmem>>, vector<128x128xbf16>
    %cst = arith.constant dense<0.000000e+00> : vector<64x128xf32>
    %2 = tpu.matmul %0, %1, %cst {dimension_numbers = #tpu.dot_dimension_numbers<[1], [0], [0], [1], [0, 0, 1, 1], [], []>} : vector<64x128xbf16>, vector<128x128xbf16>, vector<64x128xf32> -> vector<64x128xf32>
    %c0_3 = arith.constant 0 : index
    %c0_4 = arith.constant 0 : index
    %3 = vector.load %arg3[%c0_3, %c0_4] : memref<64x128xbf16, #tpu.memory_space<vmem>>, vector<64x128xbf16>
    %c0_5 = arith.constant 0 : index
    %c0_6 = arith.constant 0 : index
    %4 = vector.load %arg5[%c0_5, %c0_6] : memref<128x128xbf16, #tpu.memory_space<vmem>>, vector<128x128xbf16>
    %cst_7 = arith.constant dense<0.000000e+00> : vector<64x128xf32>
    %5 = tpu.matmul %3, %4, %cst_7 {dimension_numbers = #tpu.dot_dimension_numbers<[1], [0], [0], [1], [0, 0, 1, 1], [], []>} : vector<64x128xbf16>, vector<128x128xbf16>, vector<64x128xf32> -> vector<64x128xf32>
    %6 = arith.truncf %2 : vector<64x128xf32> to vector<64x128xbf16>
    %c0_8 = arith.constant 0 : index
    %c0_9 = arith.constant 0 : index
    %7 = vector.load %arg6[%c0_8, %c0_9] : memref<64x128xbf16, #tpu.memory_space<vmem>>, vector<64x128xbf16>
    tpu.vector_store %arg6[%c0_8, %c0_9], %6 {strides = array<i32>} : memref<64x128xbf16, #tpu.memory_space<vmem>>, vector<64x128xbf16>,
    %8 = arith.truncf %5 : vector<64x128xf32> to vector<64x128xbf16>
    %c0_10 = arith.constant 0 : index
    %c0_11 = arith.constant 0 : index
    %9 = vector.load %arg7[%c0_10, %c0_11] : memref<64x128xbf16, #tpu.memory_space<vmem>>, vector<64x128xbf16>
    tpu.vector_store %arg7[%c0_10, %c0_11], %8 {strides = array<i32>} : memref<64x128xbf16, #tpu.memory_space<vmem>>, vector<64x128xbf16>,
    %cst_12 = arith.constant dense<0.000000e+00> : vector<128xf32>
    %10 = vector.multi_reduction <add>, %2, %cst_12 [0] : vector<64x128xf32> to vector<128xf32>
    %11 = vector.shape_cast %10 : vector<128xf32> to vector<1x128xf32>
    %12 = vector.shape_cast %11 : vector<1x128xf32> to vector<1x1x128xf32>
    %13 = arith.mulf %2, %2 : vector<64x128xf32>
    %cst_13 = arith.constant dense<0.000000e+00> : vector<128xf32>
    %14 = vector.multi_reduction <add>, %13, %cst_13 [0] : vector<64x128xf32> to vector<128xf32>
    %15 = vector.shape_cast %14 : vector<128xf32> to vector<1x128xf32>
    %16 = vector.shape_cast %15 : vector<1x128xf32> to vector<1x1x128xf32>
    %cst_14 = arith.constant dense<0.000000e+00> : vector<128xf32>
    %17 = vector.multi_reduction <add>, %5, %cst_14 [0] : vector<64x128xf32> to vector<128xf32>
    %18 = vector.shape_cast %17 : vector<128xf32> to vector<1x128xf32>
    %19 = vector.shape_cast %18 : vector<1x128xf32> to vector<1x1x128xf32>
    %20 = arith.mulf %5, %5 : vector<64x128xf32>
    %cst_15 = arith.constant dense<0.000000e+00> : vector<128xf32>
    %21 = vector.multi_reduction <add>, %20, %cst_15 [0] : vector<64x128xf32> to vector<128xf32>
    %22 = vector.shape_cast %21 : vector<128xf32> to vector<1x128xf32>
    %23 = vector.shape_cast %22 : vector<1x128xf32> to vector<1x1x128xf32>
    %c0_i32 = arith.constant 0 : i32
    %24 = arith.cmpi eq, %arg1, %c0_i32 : i32
    %25 = arith.extui %24 : i1 to i32
    %c0_i32_16 = arith.constant 0 : i32
    %26 = arith.cmpi ne, %25, %c0_i32_16 : i32
    scf.if %26 {
      %c0_19 = arith.constant 0 : index
      %c0_20 = arith.constant 0 : index
      %c0_21 = arith.constant 0 : index
      %30 = vector.load %arg8[%c0_19, %c0_20, %c0_21] : memref<1x1x128xf32, #tpu.memory_space<vmem>>, vector<1x1x128xf32>
      tpu.vector_store %arg8[%c0_19, %c0_20, %c0_21], %12 {strides = array<i32>} : memref<1x1x128xf32, #tpu.memory_space<vmem>>, vector<1x1x128xf32>,
      %c0_22 = arith.constant 0 : index
      %c0_23 = arith.constant 0 : index
      %c0_24 = arith.constant 0 : index
      %31 = vector.load %arg9[%c0_22, %c0_23, %c0_24] : memref<1x1x128xf32, #tpu.memory_space<vmem>>, vector<1x1x128xf32>
      tpu.vector_store %arg9[%c0_22, %c0_23, %c0_24], %16 {strides = array<i32>} : memref<1x1x128xf32, #tpu.memory_space<vmem>>, vector<1x1x128xf32>,
      %c0_25 = arith.constant 0 : index
      %c0_26 = arith.constant 0 : index
      %c0_27 = arith.constant 0 : index
      %32 = vector.load %arg10[%c0_25, %c0_26, %c0_27] : memref<1x1x128xf32, #tpu.memory_space<vmem>>, vector<1x1x128xf32>
      tpu.vector_store %arg10[%c0_25, %c0_26, %c0_27], %19 {strides = array<i32>} : memref<1x1x128xf32, #tpu.memory_space<vmem>>, vector<1x1x128xf32>,
      %c0_28 = arith.constant 0 : index
      %c0_29 = arith.constant 0 : index
      %c0_30 = arith.constant 0 : index
      %33 = vector.load %arg11[%c0_28, %c0_29, %c0_30] : memref<1x1x128xf32, #tpu.memory_space<vmem>>, vector<1x1x128xf32>
      tpu.vector_store %arg11[%c0_28, %c0_29, %c0_30], %23 {strides = array<i32>} : memref<1x1x128xf32, #tpu.memory_space<vmem>>, vector<1x1x128xf32>,
    } else {
    }
    %c0_i32_17 = arith.constant 0 : i32
    %27 = arith.cmpi ne, %arg1, %c0_i32_17 : i32
    %28 = arith.extui %27 : i1 to i32
    %c0_i32_18 = arith.constant 0 : i32
    %29 = arith.cmpi ne, %28, %c0_i32_18 : i32
    scf.if %29 {
      %c0_19 = arith.constant 0 : index
      %c0_20 = arith.constant 0 : index
      %c0_21 = arith.constant 0 : index
      %30 = vector.load %arg8[%c0_19, %c0_20, %c0_21] : memref<1x1x128xf32, #tpu.memory_space<vmem>>, vector<1x1x128xf32>
      %31 = arith.addf %30, %12 : vector<1x1x128xf32>
      %c0_22 = arith.constant 0 : index
      %c0_23 = arith.constant 0 : index
      %c0_24 = arith.constant 0 : index
      %32 = vector.load %arg8[%c0_22, %c0_23, %c0_24] : memref<1x1x128xf32, #tpu.memory_space<vmem>>, vector<1x1x128xf32>
      tpu.vector_store %arg8[%c0_22, %c0_23, %c0_24], %31 {strides = array<i32>} : memref<1x1x128xf32, #tpu.memory_space<vmem>>, vector<1x1x128xf32>,
      %c0_25 = arith.constant 0 : index
      %c0_26 = arith.constant 0 : index
      %c0_27 = arith.constant 0 : index
      %33 = vector.load %arg9[%c0_25, %c0_26, %c0_27] : memref<1x1x128xf32, #tpu.memory_space<vmem>>, vector<1x1x128xf32>
      %34 = arith.addf %33, %16 : vector<1x1x128xf32>
      %c0_28 = arith.constant 0 : index
      %c0_29 = arith.constant 0 : index
      %c0_30 = arith.constant 0 : index
      %35 = vector.load %arg9[%c0_28, %c0_29, %c0_30] : memref<1x1x128xf32, #tpu.memory_space<vmem>>, vector<1x1x128xf32>
      tpu.vector_store %arg9[%c0_28, %c0_29, %c0_30], %34 {strides = array<i32>} : memref<1x1x128xf32, #tpu.memory_space<vmem>>, vector<1x1x128xf32>,
      %c0_31 = arith.constant 0 : index
      %c0_32 = arith.constant 0 : index
      %c0_33 = arith.constant 0 : index
      %36 = vector.load %arg10[%c0_31, %c0_32, %c0_33] : memref<1x1x128xf32, #tpu.memory_space<vmem>>, vector<1x1x128xf32>
      %37 = arith.addf %36, %19 : vector<1x1x128xf32>
      %c0_34 = arith.constant 0 : index
      %c0_35 = arith.constant 0 : index
      %c0_36 = arith.constant 0 : index
      %38 = vector.load %arg10[%c0_34, %c0_35, %c0_36] : memref<1x1x128xf32, #tpu.memory_space<vmem>>, vector<1x1x128xf32>
      tpu.vector_store %arg10[%c0_34, %c0_35, %c0_36], %37 {strides = array<i32>} : memref<1x1x128xf32, #tpu.memory_space<vmem>>, vector<1x1x128xf32>,
      %c0_37 = arith.constant 0 : index
      %c0_38 = arith.constant 0 : index
      %c0_39 = arith.constant 0 : index
      %39 = vector.load %arg11[%c0_37, %c0_38, %c0_39] : memref<1x1x128xf32, #tpu.memory_space<vmem>>, vector<1x1x128xf32>
      %40 = arith.addf %39, %23 : vector<1x1x128xf32>
      %c0_40 = arith.constant 0 : index
      %c0_41 = arith.constant 0 : index
      %c0_42 = arith.constant 0 : index
      %41 = vector.load %arg11[%c0_40, %c0_41, %c0_42] : memref<1x1x128xf32, #tpu.memory_space<vmem>>, vector<1x1x128xf32>
      tpu.vector_store %arg11[%c0_40, %c0_41, %c0_42], %40 {strides = array<i32>} : memref<1x1x128xf32, #tpu.memory_space<vmem>>, vector<1x1x128xf32>,
    } else {
    }
    return
  }
  func.func @transform_0(%arg0: i32, %arg1: i32) -> (i32, i32) {
    %c1_i32 = arith.constant 1 : i32
    %0 = arith.muli %arg0, %c1_i32 : i32
    %1 = arith.addi %0, %arg1 : i32
    %c0_i32 = arith.constant 0 : i32
    %c0_i32_0 = arith.constant 0 : i32
    return %1, %c0_i32 : i32, i32
  }
  func.func @transform_1(%arg0: i32, %arg1: i32) -> (i32, i32) {
    %c1_i32 = arith.constant 1 : i32
    %0 = arith.muli %arg0, %c1_i32 : i32
    %1 = arith.addi %0, %arg1 : i32
    %c0_i32 = arith.constant 0 : i32
    %c0_i32_0 = arith.constant 0 : i32
    return %1, %c0_i32 : i32, i32
  }
  func.func @transform_2(%arg0: i32, %arg1: i32) -> (i32, i32) {
    %c0_i32 = arith.constant 0 : i32
    %c0_i32_0 = arith.constant 0 : i32
    %c0_i32_1 = arith.constant 0 : i32
    return %c0_i32, %c0_i32_0 : i32, i32
  }
  func.func @transform_3(%arg0: i32, %arg1: i32) -> (i32, i32) {
    %c0_i32 = arith.constant 0 : i32
    %c0_i32_0 = arith.constant 0 : i32
    %c0_i32_1 = arith.constant 0 : i32
    return %c0_i32, %c0_i32_0 : i32, i32
  }
  func.func @transform_4(%arg0: i32, %arg1: i32) -> (i32, i32) {
    %c1_i32 = arith.constant 1 : i32
    %0 = arith.muli %arg0, %c1_i32 : i32
    %1 = arith.addi %0, %arg1 : i32
    %c0_i32 = arith.constant 0 : i32
    %c0_i32_0 = arith.constant 0 : i32
    return %1, %c0_i32 : i32, i32
  }
  func.func @transform_5(%arg0: i32, %arg1: i32) -> (i32, i32) {
    %c1_i32 = arith.constant 1 : i32
    %0 = arith.muli %arg0, %c1_i32 : i32
    %1 = arith.addi %0, %arg1 : i32
    %c0_i32 = arith.constant 0 : i32
    %c0_i32_0 = arith.constant 0 : i32
    return %1, %c0_i32 : i32, i32
  }
  func.func @transform_6(%arg0: i32, %arg1: i32) -> (i32, i32, i32) {
    %c0_i32 = arith.constant 0 : i32
    %c0_i32_0 = arith.constant 0 : i32
    %c0_i32_1 = arith.constant 0 : i32
    return %arg0, %c0_i32, %c0_i32_0 : i32, i32, i32
  }
  func.func @transform_7(%arg0: i32, %arg1: i32) -> (i32, i32, i32) {
    %c0_i32 = arith.constant 0 : i32
    %c0_i32_0 = arith.constant 0 : i32
    %c0_i32_1 = arith.constant 0 : i32
    return %arg0, %c0_i32, %c0_i32_0 : i32, i32, i32
  }
  func.func @transform_8(%arg0: i32, %arg1: i32) -> (i32, i32, i32) {
    %c0_i32 = arith.constant 0 : i32
    %c0_i32_0 = arith.constant 0 : i32
    %c0_i32_1 = arith.constant 0 : i32
    return %arg0, %c0_i32, %c0_i32_0 : i32, i32, i32
  }
  func.func @transform_9(%arg0: i32, %arg1: i32) -> (i32, i32, i32) {
    %c0_i32 = arith.constant 0 : i32
    %c0_i32_0 = arith.constant 0 : i32
    %c0_i32_1 = arith.constant 0 : i32
    return %arg0, %c0_i32, %c0_i32_0 : i32, i32, i32
  }
}

module attributes {stable_mosaic.version = 11 : i64} {
  func.func @_bn_add_relu_kernel(%arg0: i32, %arg1: memref<64x128xbf16, #tpu.memory_space<vmem>>, %arg2: memref<64x128xbf16, #tpu.memory_space<vmem>>, %arg3: memref<1x128xf32, #tpu.memory_space<vmem>>, %arg4: memref<1x128xf32, #tpu.memory_space<vmem>>, %arg5: memref<1x128xf32, #tpu.memory_space<vmem>>, %arg6: memref<1x128xf32, #tpu.memory_space<vmem>>, %arg7: memref<64x128xf32, #tpu.memory_space<vmem>>) attributes {dimension_semantics = [#tpu.dimension_semantics<parallel>], iteration_bounds = array<i64: 2>, scalar_prefetch = 0 : i64, scratch_operands = 0 : i64, tpu.core_type = #tpu.core_type<tc>, window_params = [{transform_indices = @transform_0, window_bounds = array<i64: 64, 128>}, {transform_indices = @transform_1, window_bounds = array<i64: 64, 128>}, {pipeline_mode = #tpu.pipeline_mode<synchronous>, transform_indices = @transform_2, window_bounds = array<i64: 1, 128>}, {pipeline_mode = #tpu.pipeline_mode<synchronous>, transform_indices = @transform_3, window_bounds = array<i64: 1, 128>}, {pipeline_mode = #tpu.pipeline_mode<synchronous>, transform_indices = @transform_4, window_bounds = array<i64: 1, 128>}, {pipeline_mode = #tpu.pipeline_mode<synchronous>, transform_indices = @transform_5, window_bounds = array<i64: 1, 128>}, {transform_indices = @transform_6, window_bounds = array<i64: 64, 128>}]} {
    %c0 = arith.constant 0 : index
    %c0_0 = arith.constant 0 : index
    %0 = vector.load %arg1[%c0, %c0_0] : memref<64x128xbf16, #tpu.memory_space<vmem>>, vector<64x128xbf16>
    %1 = arith.extf %0 : vector<64x128xbf16> to vector<64x128xf32>
    %c0_1 = arith.constant 0 : index
    %c0_2 = arith.constant 0 : index
    %2 = vector.load %arg3[%c0_1, %c0_2] : memref<1x128xf32, #tpu.memory_space<vmem>>, vector<1x128xf32>
    %3 = vector.broadcast %2 : vector<1x128xf32> to vector<64x128xf32>
    %4 = arith.mulf %1, %3 : vector<64x128xf32>
    %c0_3 = arith.constant 0 : index
    %c0_4 = arith.constant 0 : index
    %5 = vector.load %arg4[%c0_3, %c0_4] : memref<1x128xf32, #tpu.memory_space<vmem>>, vector<1x128xf32>
    %6 = vector.broadcast %5 : vector<1x128xf32> to vector<64x128xf32>
    %7 = arith.addf %4, %6 : vector<64x128xf32>
    %c0_5 = arith.constant 0 : index
    %c0_6 = arith.constant 0 : index
    %8 = vector.load %arg2[%c0_5, %c0_6] : memref<64x128xbf16, #tpu.memory_space<vmem>>, vector<64x128xbf16>
    %9 = arith.extf %8 : vector<64x128xbf16> to vector<64x128xf32>
    %c0_7 = arith.constant 0 : index
    %c0_8 = arith.constant 0 : index
    %10 = vector.load %arg5[%c0_7, %c0_8] : memref<1x128xf32, #tpu.memory_space<vmem>>, vector<1x128xf32>
    %11 = vector.broadcast %10 : vector<1x128xf32> to vector<64x128xf32>
    %12 = arith.mulf %9, %11 : vector<64x128xf32>
    %c0_9 = arith.constant 0 : index
    %c0_10 = arith.constant 0 : index
    %13 = vector.load %arg6[%c0_9, %c0_10] : memref<1x128xf32, #tpu.memory_space<vmem>>, vector<1x128xf32>
    %14 = vector.broadcast %13 : vector<1x128xf32> to vector<64x128xf32>
    %15 = arith.addf %12, %14 : vector<64x128xf32>
    %16 = arith.addf %7, %15 : vector<64x128xf32>
    %cst = arith.constant 0.000000e+00 : f32
    %17 = vector.broadcast %cst : f32 to vector<64x128xf32>
    %18 = arith.maximumf %16, %17 : vector<64x128xf32>
    %c0_11 = arith.constant 0 : index
    %c0_12 = arith.constant 0 : index
    %19 = vector.load %arg7[%c0_11, %c0_12] : memref<64x128xf32, #tpu.memory_space<vmem>>, vector<64x128xf32>
    tpu.vector_store %arg7[%c0_11, %c0_12], %18 {strides = array<i32>} : memref<64x128xf32, #tpu.memory_space<vmem>>, vector<64x128xf32>,
    return
  }
  func.func @transform_0(%arg0: i32) -> (i32, i32) {
    %c0_i32 = arith.constant 0 : i32
    %c0_i32_0 = arith.constant 0 : i32
    return %arg0, %c0_i32 : i32, i32
  }
  func.func @transform_1(%arg0: i32) -> (i32, i32) {
    %c0_i32 = arith.constant 0 : i32
    %c0_i32_0 = arith.constant 0 : i32
    return %arg0, %c0_i32 : i32, i32
  }
  func.func @transform_2(%arg0: i32) -> (i32, i32) {
    %c0_i32 = arith.constant 0 : i32
    %c0_i32_0 = arith.constant 0 : i32
    %c0_i32_1 = arith.constant 0 : i32
    return %c0_i32, %c0_i32_0 : i32, i32
  }
  func.func @transform_3(%arg0: i32) -> (i32, i32) {
    %c0_i32 = arith.constant 0 : i32
    %c0_i32_0 = arith.constant 0 : i32
    %c0_i32_1 = arith.constant 0 : i32
    return %c0_i32, %c0_i32_0 : i32, i32
  }
  func.func @transform_4(%arg0: i32) -> (i32, i32) {
    %c0_i32 = arith.constant 0 : i32
    %c0_i32_0 = arith.constant 0 : i32
    %c0_i32_1 = arith.constant 0 : i32
    return %c0_i32, %c0_i32_0 : i32, i32
  }
  func.func @transform_5(%arg0: i32) -> (i32, i32) {
    %c0_i32 = arith.constant 0 : i32
    %c0_i32_0 = arith.constant 0 : i32
    %c0_i32_1 = arith.constant 0 : i32
    return %c0_i32, %c0_i32_0 : i32, i32
  }
  func.func @transform_6(%arg0: i32) -> (i32, i32) {
    %c0_i32 = arith.constant 0 : i32
    %c0_i32_0 = arith.constant 0 : i32
    return %arg0, %c0_i32 : i32, i32
  }
}

</mosaic_0001>

<llo_original>
// kernel: fwd.5
$region0: #{fwd.5}
  #allocation0 [shape = 'u32[]', space=smem, size = 0x4, offset = 0x4, fixed_abs, tag = 'smem constant byte address 0x4 - core index']
  #allocation1 [shape = 'u32[144,128]{1,0:T(1,128)}', space=vmem, size = 0x12000, scoped, tag = 'internal scratch']
  %s0 = inlined_call_operand.vmem [shape: bf16[128,128], index: 0, kind: input, shape index: {}]
  %s1 = inlined_call_operand.vmem [shape: f32[1,128], index: 1, kind: input, shape index: {}]
  %s2 = inlined_call_operand.vmem [shape: f32[1,128], index: 2, kind: input, shape index: {}]
  %s3 = inlined_call_operand.vmem [shape: bf16[128,128], index: 3, kind: output, shape index: {}]
  %s4 = sld [smem:[#allocation0]]
  $region45: #{fwd.5} parent=0
    _
  %s6 = ssub.s32 1, %s4
  %s7 = scalar_select 0, %s6, %s4
  loop: start=0, step=1, limit=4
  $region2: #{fwd.5} parent=0 // loop_pre_header
    _
  $region3: #{fwd.5} parent=0 // loop_header
    %s9 = sphi 0, %s13
    %p10 = scmp.ge.s32.totalorder %s9, 4
    %s19 = sphi 0, %s21
    %s22 = sphi 0, %s19
    %s23 = sphi 0, %s22
    %s39 = sphi 0, %s23
    %s43 = sphi 0, %s43
    %s45 = sphi 0, %s43
    %s46 = sphi 0, %s45
    %s60 = sphi 0, %s46
    %s64 = sphi 0, %s64
    %s66 = sphi 0, %s64
    %s67 = sphi 0, %s66
    %s81 = sphi 0, %s67
    %s87 = sphi 0, %s89
    %s90 = sphi 0, %s87
    %s91 = sphi 0, %s90
    %s107 = sphi 0, %s91
  $region4: #{fwd.5} parent=0 // loop_header_branch
    %12 = sbr.rel (%p10) target = $region8
  $region5: #{fwd.5} parent=0 // loop_body
    %s14 = ssub.s32 %s9, 1
    %s15 = ssub.s32 %s9, 2
    %s16 = sadd.s32 %s9, 1
    %s17 = ssub.s32 %s9, %s16
    %p18 = scmp.eq.s32.totalorder %s17, 0
    %s20 = sadd.s32 %s19, 1
    %s21 = scalar_select %p18, %s19, %s20
    %p24 = pneg %p18
    %p25 = scmp.eq.s32.totalorder %s9, 1
    %p26 = por %p24, %p25
    %p27 = scmp.ne.s32.totalorder %s19, %s22
    %p28 = scmp.eq.s32.totalorder %s9, 0
    %p29 = por %p27, %p28
    %p30 = scmp.ne.s32.totalorder %s19, %s22
    %p31 = scmp.eq.s32.totalorder %s14, 1
    %p32 = por %p30, %p31
    %p33 = scmp.ne.s32.totalorder %s22, %s23
    %p34 = scmp.eq.s32.totalorder %s14, 0
    %p35 = por %p33, %p34
    %p36 = scmp.ne.s32.totalorder %s22, %s23
    %p37 = scmp.eq.s32.totalorder %s15, 1
    %p38 = por %p36, %p37
    %p40 = scmp.ne.s32.totalorder %s23, %s39
    %p41 = scmp.eq.s32.totalorder %s15, 0
    %p42 = por %p40, %p41
    %s44 = sadd.s32 %s43, 1
    %p47 = scmp.eq.s32.totalorder %s9, 1
    %p48 = scmp.ne.s32.totalorder %s43, %s45
    %p49 = scmp.eq.s32.totalorder %s9, 0
    %p50 = por %p48, %p49
    %p51 = scmp.ne.s32.totalorder %s43, %s45
    %p52 = scmp.eq.s32.totalorder %s14, 1
    %p53 = por %p51, %p52
    %p54 = scmp.ne.s32.totalorder %s45, %s46
    %p55 = scmp.eq.s32.totalorder %s14, 0
    %p56 = por %p54, %p55
    %p57 = scmp.ne.s32.totalorder %s45, %s46
    %p58 = scmp.eq.s32.totalorder %s15, 1
    %p59 = por %p57, %p58
    %p61 = scmp.ne.s32.totalorder %s46, %s60
    %p62 = scmp.eq.s32.totalorder %s15, 0
    %p63 = por %p61, %p62
    %s65 = sadd.s32 %s64, 1
    %p68 = scmp.eq.s32.totalorder %s9, 1
    %p69 = scmp.ne.s32.totalorder %s64, %s66
    %p70 = scmp.eq.s32.totalorder %s9, 0
    %p71 = por %p69, %p70
    %p72 = scmp.ne.s32.totalorder %s64, %s66
    %p73 = scmp.eq.s32.totalorder %s14, 1
    %p74 = por %p72, %p73
    %p75 = scmp.ne.s32.totalorder %s66, %s67
    %p76 = scmp.eq.s32.totalorder %s14, 0
    %p77 = por %p75, %p76
    %p78 = scmp.ne.s32.totalorder %s66, %s67
    %p79 = scmp.eq.s32.totalorder %s15, 1
    %p80 = por %p78, %p79
    %p82 = scmp.ne.s32.totalorder %s67, %s81
    %p83 = scmp.eq.s32.totalorder %s15, 0
    %p84 = por %p82, %p83
    %s85 = ssub.s32 %s9, %s16
    %p86 = scmp.eq.s32.totalorder %s85, 0
    %s88 = sadd.s32 %s87, 1
    %s89 = scalar_select %p86, %s87, %s88
    %p92 = pneg %p86
    %p93 = scmp.eq.s32.totalorder %s9, 1
    %p94 = por %p92, %p93
    %p95 = scmp.ne.s32.totalorder %s87, %s90
    %p96 = scmp.eq.s32.totalorder %s9, 0
    %p97 = por %p95, %p96
    %p98 = scmp.ne.s32.totalorder %s87, %s90
    %p99 = scmp.eq.s32.totalorder %s14, 1
    %p100 = por %p98, %p99
    %p101 = scmp.ne.s32.totalorder %s90, %s91
    %p102 = scmp.eq.s32.totalorder %s14, 0
    %p103 = por %p101, %p102
    %p104 = scmp.ne.s32.totalorder %s90, %s91
    %p105 = scmp.eq.s32.totalorder %s15, 1
    %p106 = por %p104, %p105
    %p108 = scmp.ne.s32.totalorder %s91, %s107
    %p109 = scmp.eq.s32.totalorder %s15, 0
    %p110 = por %p108, %p109
    %p111 = scmp.le.s32.totalorder 1, %s9
    %p112 = scmp.lt.s32.totalorder %s9, 3
    %p113 = pnand %p111, %p112
    %p114 = pneg %p113
    // Predicated region
    $region9: #{fwd.5} parent=5 // pred_check
      _
    $region10: #{fwd.5} parent=5 // pred_check_branch
      %116 = sbr.rel (%p113) target = $region12
    $region11: #{fwd.5} parent=5 // pred_region
      %s117 = ssub.s32 %s9, 1
      // Predicated region
      $region13: #{fwd.5} parent=11 // pred_check
        %p118 = pneg %p56
      $region14: #{fwd.5} parent=11 // pred_check_branch
        %120 = sbr.rel (%p118) target = $region16
      $region15: #{fwd.5} parent=11 // pred_region
        _
      $region16: #{fwd.5} parent=11 // pred_fallthru
        _
      // Predicated region
      $region17: #{fwd.5} parent=11 // pred_check
        %p121 = pneg %p77
      $region18: #{fwd.5} parent=11 // pred_check_branch
        %123 = sbr.rel (%p121) target = $region20
      $region19: #{fwd.5} parent=11 // pred_region
        _
      $region20: #{fwd.5} parent=11 // pred_fallthru
        _
    $region12: #{fwd.5} parent=5 // pred_fallthru
      _
    %p124 = scmp.lt.s32.totalorder %s9, 2
    // Predicated region
    $region21: #{fwd.5} parent=5 // pred_check
      %p125 = pneg %p124
    $region22: #{fwd.5} parent=5 // pred_check_branch
      %127 = sbr.rel (%p125) target = $region24
    $region23: #{fwd.5} parent=5 // pred_region
      // Predicated region
      $region25: #{fwd.5} parent=23 // pred_check
        %p128 = pneg %p29
      $region26: #{fwd.5} parent=23 // pred_check_branch
        %130 = sbr.rel (%p128) target = $region28
      $region27: #{fwd.5} parent=23 // pred_region
        %s131 = smul.u32 8, %s9
        %p132 = scmp.lt.s32.totalorder %s131, 15
        %s133 = scalar_select %p132, %s131, 15
        %s134 = smul.addr %s133, 4
        %s135 = scalar_lea.vmem %s0, %s134
        %s136 = smul.u32 8, %s9
      $region28: #{fwd.5} parent=23 // pred_fallthru
        _
    $region24: #{fwd.5} parent=5 // pred_fallthru
      _
    %p137 = scmp.le.s32.totalorder 1, %s9
    %p138 = scmp.lt.s32.totalorder %s9, 3
    %p139 = pnand %p137, %p138
    %p140 = pneg %p139
    // Predicated region
    $region29: #{fwd.5} parent=5 // pred_check
      _
    $region30: #{fwd.5} parent=5 // pred_check_branch
      %142 = sbr.rel (%p139) target = $region32
    $region31: #{fwd.5} parent=5 // pred_region
      %s143 = ssub.s32 %s9, 1
      %s144 = smul.u32 8, %s14
      %p145 = scmp.lt.s32.totalorder %s144, 15
      %s146 = scalar_select %p145, %s144, 15
      %s147 = smul.addr %s146, 4
      %s148 = scalar_lea.vmem %s0, %s147
      %p149 = pneg %p35
      %p150 = pneg %p32
      %p151 = pneg %p56
      %p152 = pneg %p53
      %p153 = pneg %p77
      %p154 = pneg %p74
      %p155 = pneg %p103
      %p156 = pneg %p100
      %s157 = smul.u32 8, %s14
      %p158 = scmp.lt.s32.totalorder %s157, 15
      %s159 = scalar_select %p158, %s157, 15
      %s160 = smul.addr %s159, 4
      %s161 = scalar_lea.vmem %s3, %s160
      %s162 = smul.u32 8, %s14
      %p163 = scmp.lt.s32.totalorder %s162, 15
      %s164 = scalar_select %p163, %s162, 15
      %s165 = smul.addr %s164, 4
      %s166 = scalar_lea.vmem %s0, %s165
      %s167 = smul.u32 8, %s14
      %s168 = smul.u32 8, %s14
      %p169 = scmp.lt.s32.totalorder %s168, 15
      %s170 = scalar_select %p169, %s168, 15
      %s171 = smul.addr %s170, 4
      %s172 = scalar_lea.vmem %s3, %s171
      %s173 = smul.u32 8, %s14
      %v174 = vld [vmem:[%s166] sm:$0xf]
      %v175 = vld [vmem:[%s166 + $0x4] sm:$0xf]
      %v176 = vld [vmem:[%s166 + $0x8] sm:$0xf]
      %v177 = vld [vmem:[%s166 + $0xc] sm:$0xf]
      %v178 = vld [vmem:[%s166 + $0x10] sm:$0xf]
      %v179 = vld [vmem:[%s166 + $0x14] sm:$0xf]
      %v180 = vld [vmem:[%s166 + $0x18] sm:$0xf]
      %v181 = vld [vmem:[%s166 + $0x1c] sm:$0xf]
      %v182 = vunpack.c.l.bf16 %v174
      %v183 = vunpack.c.l.bf16 %v175
      %v184 = vunpack.c.l.bf16 %v176
      %v185 = vunpack.c.l.bf16 %v177
      %v186 = vunpack.c.l.bf16 %v178
      %v187 = vunpack.c.l.bf16 %v179
      %v188 = vunpack.c.l.bf16 %v180
      %v189 = vunpack.c.l.bf16 %v181
      %v190 = vld [vmem:[%s1] sm:$0x1]
      %v192 = vlaneseq
      %v193 = vshrl.u32 %v192, 7
      %v194 = vsub.s32 0, %v193
      %v195 = vrot.slane %v190, %v194
      %v197 = vmul.f32 %v182, %v195
      %v198 = vmul.f32 %v183, %v195
      %v199 = vmul.f32 %v184, %v195
      %v200 = vmul.f32 %v185, %v195
      %v201 = vmul.f32 %v186, %v195
      %v202 = vmul.f32 %v187, %v195
      %v203 = vmul.f32 %v188, %v195
      %v204 = vmul.f32 %v189, %v195
      %v205 = vld [vmem:[%s2] sm:$0x1]
      %v207 = vlaneseq
      %v208 = vshrl.u32 %v207, 7
      %v209 = vsub.s32 0, %v208
      %v210 = vrot.slane %v205, %v209
      %v212 = vadd.f32 %v197, %v210
      %v213 = vadd.f32 %v198, %v210
      %v214 = vadd.f32 %v199, %v210
      %v215 = vadd.f32 %v200, %v210
      %v216 = vadd.f32 %v201, %v210
      %v217 = vadd.f32 %v202, %v210
      %v218 = vadd.f32 %v203, %v210
      %v219 = vadd.f32 %v204, %v210
      %v220 = vmax.f32 %v212, 0.0
      %v221 = vmax.f32 %v213, 0.0
      %v222 = vmax.f32 %v214, 0.0
      %v223 = vmax.f32 %v215, 0.0
      %v224 = vmax.f32 %v216, 0.0
      %v225 = vmax.f32 %v217, 0.0
      %v226 = vmax.f32 %v218, 0.0
      %v227 = vmax.f32 %v219, 0.0
      %v228 = vpack.c.bf16 %v221, %v220
      %v229 = vpack.c.bf16 %v223, %v222
      %v230 = vpack.c.bf16 %v225, %v224
      %v231 = vpack.c.bf16 %v227, %v226
      %v236 = vunpack.c.l.b16 %v228
      %v237 = vunpack.c.h.b16 %v228
      %v238 = vunpack.c.l.b16 %v229
      %v239 = vunpack.c.h.b16 %v229
      %v240 = vunpack.c.l.b16 %v230
      %v241 = vunpack.c.h.b16 %v230
      %v242 = vunpack.c.l.b16 %v231
      %v243 = vunpack.c.h.b16 %v231
      %v244 = vpack.c.b16 %v236, %v236
      %v245 = vpack.c.b16 %v237, %v237
      %v246 = vpack.c.b16 %v238, %v238
      %v247 = vpack.c.b16 %v239, %v239
      %v248 = vpack.c.b16 %v240, %v240
      %v249 = vpack.c.b16 %v241, %v241
      %v250 = vpack.c.b16 %v242, %v242
      %v251 = vpack.c.b16 %v243, %v243
      %260 = vst [vmem:[%s172] sm:$0xf] %v244
      %261 = vst [vmem:[%s172 + $0x4] sm:$0xf] %v245
      %262 = vst [vmem:[%s172 + $0x8] sm:$0xf] %v246
      %263 = vst [vmem:[%s172 + $0xc] sm:$0xf] %v247
      %264 = vst [vmem:[%s172 + $0x10] sm:$0xf] %v248
      %265 = vst [vmem:[%s172 + $0x14] sm:$0xf] %v249
      %266 = vst [vmem:[%s172 + $0x18] sm:$0xf] %v250
      %267 = vst [vmem:[%s172 + $0x1c] sm:$0xf] %v251
      %s268 = smul.u32 8, %s14
      %p269 = scmp.lt.s32.totalorder %s268, 15
      %s270 = scalar_select %p269, %s268, 15
      %s271 = smul.addr %s270, 4
      %s272 = scalar_lea.vmem %s3, %s271
      // Predicated region
      $region33: #{fwd.5} parent=31 // pred_check
        %p273 = pneg %p100
      $region34: #{fwd.5} parent=31 // pred_check_branch
        %275 = sbr.rel (%p273) target = $region36
      $region35: #{fwd.5} parent=31 // pred_region
        %s276 = smul.u32 8, %s14
      $region36: #{fwd.5} parent=31 // pred_fallthru
        _
    $region32: #{fwd.5} parent=5 // pred_fallthru
      _
    %p277 = scmp.le.s32.totalorder 2, %s9
    // Predicated region
    $region37: #{fwd.5} parent=5 // pred_check
      %p278 = pneg %p277
    $region38: #{fwd.5} parent=5 // pred_check_branch
      %280 = sbr.rel (%p278) target = $region40
    $region39: #{fwd.5} parent=5 // pred_region
      %s281 = ssub.s32 %s9, 2
      // Predicated region
      $region41: #{fwd.5} parent=39 // pred_check
        %p282 = pneg %p106
      $region42: #{fwd.5} parent=39 // pred_check_branch
        %284 = sbr.rel (%p282) target = $region44
      $region43: #{fwd.5} parent=39 // pred_region
        %s285 = smul.u32 8, %s15
        %p286 = scmp.lt.s32.totalorder %s285, 15
        %s287 = scalar_select %p286, %s285, 15
        %s288 = smul.addr %s287, 4
        %s289 = scalar_lea.vmem %s3, %s288
      $region44: #{fwd.5} parent=39 // pred_fallthru
        _
    $region40: #{fwd.5} parent=5 // pred_fallthru
      _
  $region6: #{fwd.5} parent=0 // loop_footer
    %s13 = sadd.s32 1, %s9
  $region7: #{fwd.5} parent=0 // loop_footer_branch
    %8 = sbr.rel target = $region3
  $region8: #{fwd.5} parent=0 // loop_exit
    _

// kernel: fwd.4
$region0: #{fwd.4}
  #allocation0 [shape = 'u32[]', space=smem, size = 0x4, offset = 0x4, fixed_abs, tag = 'smem constant byte address 0x4 - core index']
  #allocation1 [shape = 'u32[144,128]{1,0:T(1,128)}', space=vmem, size = 0x12000, scoped, tag = 'internal scratch']
  %s0 = inlined_call_operand.vmem [shape: bf16[128,128], index: 0, kind: input, shape index: {}]
  %s1 = inlined_call_operand.vmem [shape: bf16[128,128], index: 1, kind: input, shape index: {}]
  %s2 = inlined_call_operand.vmem [shape: bf16[128,128], index: 2, kind: output, shape index: {0}]
  %s3 = inlined_call_operand.vmem [shape: f32[2,1,128], index: 3, kind: output, shape index: {1}]
  %s4 = inlined_call_operand.vmem [shape: f32[2,1,128], index: 4, kind: output, shape index: {2}]
  %5 = xla_tuple %s2, %s3, %s4
  %s6 = sld [smem:[#allocation0]]
  $region65: #{fwd.4} parent=0
    _
  %s8 = ssub.s32 1, %s6
  %s9 = scalar_select 0, %s8, %s6
  loop: start=0, step=1, limit=4
  $region2: #{fwd.4} parent=0 // loop_pre_header
    _
  $region3: #{fwd.4} parent=0 // loop_header
    %s11 = sphi 0, %s15
    %p12 = scmp.ge.s32.totalorder %s11, 4
    %s18 = sphi 0, %s30
    %s19 = sphi 0, %s26
    %s20 = sphi 0, %s18
    %s21 = sphi 0, %s19
    %s22 = sphi 0, %s20
    %s23 = sphi 0, %s21
    %s35 = sphi 0, %s37
    %s38 = sphi 0, %s35
    %s39 = sphi 0, %s38
    %s55 = sphi 0, %s39
    %s59 = sphi 0, %s59
    %s61 = sphi 0, %s59
    %s62 = sphi 0, %s61
    %s76 = sphi 0, %s62
    %s84 = sphi 0, %s86
    %s87 = sphi 0, %s84
    %s88 = sphi 0, %s87
    %s104 = sphi 0, %s88
    %s110 = sphi 0, %s112
    %s113 = sphi 0, %s110
    %s114 = sphi 0, %s113
    %s130 = sphi 0, %s114
    %s136 = sphi 0, %s138
    %s139 = sphi 0, %s136
    %s140 = sphi 0, %s139
    %s156 = sphi 0, %s140
  $region4: #{fwd.4} parent=0 // loop_header_branch
    %14 = sbr.rel (%p12) target = $region8
  $region5: #{fwd.4} parent=0 // loop_body
    %s16 = ssub.s32 %s11, 1
    %s17 = ssub.s32 %s11, 2
    %s24 = sadd.s32 1, %s19
    %p25 = scmp.ge.s32.totalorder %s24, 1
    %s26 = scalar_select %p25, 0, %s24
    %s27 = sadd.s32 1, %s18
    %s28 = scalar_select %p25, %s27, %s18
    %p29 = scmp.ge.s32.totalorder %s28, 2
    %s30 = scalar_select %p29, 0, %s28
    %s31 = sadd.s32 %s18, %s19
    %s32 = sadd.s32 %s30, %s26
    %s33 = ssub.s32 %s31, %s32
    %p34 = scmp.eq.s32.totalorder %s33, 0
    %s36 = sadd.s32 %s35, 1
    %s37 = scalar_select %p34, %s35, %s36
    %p40 = pneg %p34
    %p41 = scmp.eq.s32.totalorder %s11, 1
    %p42 = por %p40, %p41
    %p43 = scmp.ne.s32.totalorder %s35, %s38
    %p44 = scmp.eq.s32.totalorder %s11, 0
    %p45 = por %p43, %p44
    %p46 = scmp.ne.s32.totalorder %s35, %s38
    %p47 = scmp.eq.s32.totalorder %s16, 1
    %p48 = por %p46, %p47
    %p49 = scmp.ne.s32.totalorder %s38, %s39
    %p50 = scmp.eq.s32.totalorder %s16, 0
    %p51 = por %p49, %p50
    %p52 = scmp.ne.s32.totalorder %s38, %s39
    %p53 = scmp.eq.s32.totalorder %s17, 1
    %p54 = por %p52, %p53
    %p56 = scmp.ne.s32.totalorder %s39, %s55
    %p57 = scmp.eq.s32.totalorder %s17, 0
    %p58 = por %p56, %p57
    %s60 = sadd.s32 %s59, 1
    %p63 = scmp.eq.s32.totalorder %s11, 1
    %p64 = scmp.ne.s32.totalorder %s59, %s61
    %p65 = scmp.eq.s32.totalorder %s11, 0
    %p66 = por %p64, %p65
    %p67 = scmp.ne.s32.totalorder %s59, %s61
    %p68 = scmp.eq.s32.totalorder %s16, 1
    %p69 = por %p67, %p68
    %p70 = scmp.ne.s32.totalorder %s61, %s62
    %p71 = scmp.eq.s32.totalorder %s16, 0
    %p72 = por %p70, %p71
    %p73 = scmp.ne.s32.totalorder %s61, %s62
    %p74 = scmp.eq.s32.totalorder %s17, 1
    %p75 = por %p73, %p74
    %p77 = scmp.ne.s32.totalorder %s62, %s76
    %p78 = scmp.eq.s32.totalorder %s17, 0
    %p79 = por %p77, %p78
    %s80 = sadd.s32 %s18, %s19
    %s81 = sadd.s32 %s30, %s26
    %s82 = ssub.s32 %s80, %s81
    %p83 = scmp.eq.s32.totalorder %s82, 0
    %s85 = sadd.s32 %s84, 1
    %s86 = scalar_select %p83, %s84, %s85
    %p89 = pneg %p83
    %p90 = scmp.eq.s32.totalorder %s11, 1
    %p91 = por %p89, %p90
    %p92 = scmp.ne.s32.totalorder %s84, %s87
    %p93 = scmp.eq.s32.totalorder %s11, 0
    %p94 = por %p92, %p93
    %p95 = scmp.ne.s32.totalorder %s84, %s87
    %p96 = scmp.eq.s32.totalorder %s16, 1
    %p97 = por %p95, %p96
    %p98 = scmp.ne.s32.totalorder %s87, %s88
    %p99 = scmp.eq.s32.totalorder %s16, 0
    %p100 = por %p98, %p99
    %p101 = scmp.ne.s32.totalorder %s87, %s88
    %p102 = scmp.eq.s32.totalorder %s17, 1
    %p103 = por %p101, %p102
    %p105 = scmp.ne.s32.totalorder %s88, %s104
    %p106 = scmp.eq.s32.totalorder %s17, 0
    %p107 = por %p105, %p106
    %s108 = ssub.s32 %s18, %s30
    %p109 = scmp.eq.s32.totalorder %s108, 0
    %s111 = sadd.s32 %s110, 1
    %s112 = scalar_select %p109, %s110, %s111
    %p115 = pneg %p109
    %p116 = scmp.eq.s32.totalorder %s11, 1
    %p117 = por %p115, %p116
    %p118 = scmp.ne.s32.totalorder %s110, %s113
    %p119 = scmp.eq.s32.totalorder %s11, 0
    %p120 = por %p118, %p119
    %p121 = scmp.ne.s32.totalorder %s110, %s113
    %p122 = scmp.eq.s32.totalorder %s16, 1
    %p123 = por %p121, %p122
    %p124 = scmp.ne.s32.totalorder %s113, %s114
    %p125 = scmp.eq.s32.totalorder %s16, 0
    %p126 = por %p124, %p125
    %p127 = scmp.ne.s32.totalorder %s113, %s114
    %p128 = scmp.eq.s32.totalorder %s17, 1
    %p129 = por %p127, %p128
    %p131 = scmp.ne.s32.totalorder %s114, %s130
    %p132 = scmp.eq.s32.totalorder %s17, 0
    %p133 = por %p131, %p132
    %s134 = ssub.s32 %s18, %s30
    %p135 = scmp.eq.s32.totalorder %s134, 0
    %s137 = sadd.s32 %s136, 1
    %s138 = scalar_select %p135, %s136, %s137
    %p141 = pneg %p135
    %p142 = scmp.eq.s32.totalorder %s11, 1
    %p143 = por %p141, %p142
    %p144 = scmp.ne.s32.totalorder %s136, %s139
    %p145 = scmp.eq.s32.totalorder %s11, 0
    %p146 = por %p144, %p145
    %p147 = scmp.ne.s32.totalorder %s136, %s139
    %p148 = scmp.eq.s32.totalorder %s16, 1
    %p149 = por %p147, %p148
    %p150 = scmp.ne.s32.totalorder %s139, %s140
    %p151 = scmp.eq.s32.totalorder %s16, 0
    %p152 = por %p150, %p151
    %p153 = scmp.ne.s32.totalorder %s139, %s140
    %p154 = scmp.eq.s32.totalorder %s17, 1
    %p155 = por %p153, %p154
    %p157 = scmp.ne.s32.totalorder %s140, %s156
    %p158 = scmp.eq.s32.totalorder %s17, 0
    %p159 = por %p157, %p158
    %p160 = scmp.le.s32.totalorder 1, %s11
    %p161 = scmp.lt.s32.totalorder %s11, 3
    %p162 = pnand %p160, %p161
    %p163 = pneg %p162
    // Predicated region
    $region9: #{fwd.4} parent=5 // pred_check
      _
    $region10: #{fwd.4} parent=5 // pred_check_branch
      %165 = sbr.rel (%p162) target = $region12
    $region11: #{fwd.4} parent=5 // pred_region
      %s166 = ssub.s32 %s11, 1
      // Predicated region
      $region13: #{fwd.4} parent=11 // pred_check
        %p167 = pneg %p72
      $region14: #{fwd.4} parent=11 // pred_check_branch
        %169 = sbr.rel (%p167) target = $region16
      $region15: #{fwd.4} parent=11 // pred_region
        _
      $region16: #{fwd.4} parent=11 // pred_fallthru
        _
    $region12: #{fwd.4} parent=5 // pred_fallthru
      _
    %p170 = scmp.lt.s32.totalorder %s11, 2
    // Predicated region
    $region17: #{fwd.4} parent=5 // pred_check
      %p171 = pneg %p170
    $region18: #{fwd.4} parent=5 // pred_check_branch
      %173 = sbr.rel (%p171) target = $region20
    $region19: #{fwd.4} parent=5 // pred_region
      // Predicated region
      $region21: #{fwd.4} parent=19 // pred_check
        %p174 = pneg %p45
      $region22: #{fwd.4} parent=19 // pred_check_branch
        %176 = sbr.rel (%p174) target = $region24
      $region23: #{fwd.4} parent=19 // pred_region
        %s177 = sadd.s32 %s18, %s19
        %s178 = smul.u32 8, %s177
        %p179 = scmp.lt.s32.totalorder %s178, 15
        %s180 = scalar_select %p179, %s178, 15
        %s181 = smul.addr %s180, 4
        %s182 = scalar_lea.vmem %s0, %s181
        %s183 = sadd.s32 %s18, %s19
        %s184 = smul.u32 8, %s183
      $region24: #{fwd.4} parent=19 // pred_fallthru
        _
    $region20: #{fwd.4} parent=5 // pred_fallthru
      _
    %p185 = scmp.le.s32.totalorder 1, %s11
    %p186 = scmp.lt.s32.totalorder %s11, 3
    %p187 = pnand %p185, %p186
    %p188 = pneg %p187
    // Predicated region
    $region25: #{fwd.4} parent=5 // pred_check
      _
    $region26: #{fwd.4} parent=5 // pred_check_branch
      %190 = sbr.rel (%p187) target = $region28
    $region27: #{fwd.4} parent=5 // pred_region
      %s191 = ssub.s32 %s11, 1
      %s192 = sadd.s32 %s20, %s21
      %s193 = smul.u32 8, %s192
      %p194 = scmp.lt.s32.totalorder %s193, 15
      %s195 = scalar_select %p194, %s193, 15
      %s196 = smul.addr %s195, 4
      %s197 = scalar_lea.vmem %s0, %s196
      %p198 = pneg %p51
      %p199 = pneg %p48
      %p200 = pneg %p72
      %p201 = pneg %p69
      %p202 = pneg %p100
      %p203 = pneg %p97
      %s204 = sadd.s32 %s20, %s21
      %s205 = smul.u32 8, %s204
      %p206 = scmp.lt.s32.totalorder %s205, 15
      %s207 = scalar_select %p206, %s205, 15
      %s208 = smul.addr %s207, 4
      %s209 = scalar_lea.vmem %s2, %s208
      %p210 = pneg %p126
      %p211 = pneg %p123
      %p212 = scmp.lt.s32.totalorder %s20, 1
      %s213 = scalar_select %p212, %s20, 1
      %s214 = scalar_lea.vmem %s3, %s213
      %p215 = pneg %p152
      %p216 = pneg %p149
      %p217 = scmp.lt.s32.totalorder %s20, 1
      %s218 = scalar_select %p217, %s20, 1
      %s219 = scalar_lea.vmem %s4, %s218
      %s220 = sadd.s32 %s20, %s21
      %s221 = smul.u32 8, %s220
      %p222 = scmp.lt.s32.totalorder %s221, 15
      %s223 = scalar_select %p222, %s221, 15
      %s224 = smul.addr %s223, 4
      %s225 = scalar_lea.vmem %s0, %s224
      %s226 = sadd.s32 %s20, %s21
      %s227 = smul.u32 8, %s226
      %s228 = sadd.s32 %s20, %s21
      %s229 = smul.u32 8, %s228
      %p230 = scmp.lt.s32.totalorder %s229, 15
      %s231 = scalar_select %p230, %s229, 15
      %s232 = smul.addr %s231, 4
      %s233 = scalar_lea.vmem %s2, %s232
      %s234 = sadd.s32 %s20, %s21
      %s235 = smul.u32 8, %s234
      %p236 = scmp.lt.s32.totalorder %s20, 1
      %s237 = scalar_select %p236, %s20, 1
      %s238 = scalar_lea.vmem %s3, %s237
      %p239 = scmp.lt.s32.totalorder %s20, 1
      %s240 = scalar_select %p239, %s20, 1
      %s241 = scalar_lea.vmem %s4, %s240
      %v243 = vld [vmem:[%s225] sm:$0xf]
      %v244 = vld [vmem:[%s225 + $0x4] sm:$0xf]
      %v245 = vld [vmem:[%s225 + $0x8] sm:$0xf]
      %v246 = vld [vmem:[%s225 + $0xc] sm:$0xf]
      %v247 = vld [vmem:[%s225 + $0x10] sm:$0xf]
      %v248 = vld [vmem:[%s225 + $0x14] sm:$0xf]
      %v249 = vld [vmem:[%s225 + $0x18] sm:$0xf]
      %v250 = vld [vmem:[%s225 + $0x1c] sm:$0xf]
      %v251 = vld [vmem:[%s1] sm:$0xf]
      %v252 = vld [vmem:[%s1 + $0x4] sm:$0xf]
      %v253 = vld [vmem:[%s1 + $0x8] sm:$0xf]
      %v254 = vld [vmem:[%s1 + $0xc] sm:$0xf]
      %v255 = vld [vmem:[%s1 + $0x10] sm:$0xf]
      %v256 = vld [vmem:[%s1 + $0x14] sm:$0xf]
      %v257 = vld [vmem:[%s1 + $0x18] sm:$0xf]
      %v258 = vld [vmem:[%s1 + $0x1c] sm:$0xf]
      %v259 = vld [vmem:[%s1 + $0x20] sm:$0xf]
      %v260 = vld [vmem:[%s1 + $0x24] sm:$0xf]
      %v261 = vld [vmem:[%s1 + $0x28] sm:$0xf]
      %v262 = vld [vmem:[%s1 + $0x2c] sm:$0xf]
      %v263 = vld [vmem:[%s1 + $0x30] sm:$0xf]
      %v264 = vld [vmem:[%s1 + $0x34] sm:$0xf]
      %v265 = vld [vmem:[%s1 + $0x38] sm:$0xf]
      %v266 = vld [vmem:[%s1 + $0x3c] sm:$0xf]
      %v275 = vunpack.c.l.b16 %v243
      %v276 = vunpack.c.l.b16 %v244
      %v277 = vunpack.c.l.b16 %v245
      %v278 = vunpack.c.l.b16 %v246
      %v279 = vunpack.c.l.b16 %v247
      %v280 = vunpack.c.l.b16 %v248
      %v281 = vunpack.c.l.b16 %v249
      %v282 = vunpack.c.l.b16 %v250
      %v283 = vpack.c.b16 %v276, %v275
      %v284 = vpack.c.b16 %v278, %v277
      %v285 = vpack.c.b16 %v280, %v279
      %v286 = vpack.c.b16 %v282, %v281
      %v307 = vunpack.c.l.b16 %v251
      %v308 = vunpack.c.l.b16 %v252
      %v309 = vunpack.c.l.b16 %v253
      %v310 = vunpack.c.l.b16 %v254
      %v311 = vunpack.c.l.b16 %v255
      %v312 = vunpack.c.l.b16 %v256
      %v313 = vunpack.c.l.b16 %v257
      %v314 = vunpack.c.l.b16 %v258
      %v315 = vunpack.c.l.b16 %v259
      %v316 = vunpack.c.l.b16 %v260
      %v317 = vunpack.c.l.b16 %v261
      %v318 = vunpack.c.l.b16 %v262
      %v319 = vunpack.c.l.b16 %v263
      %v320 = vunpack.c.l.b16 %v264
      %v321 = vunpack.c.l.b16 %v265
      %v322 = vunpack.c.l.b16 %v266
      %v323 = vpack.c.b16 %v308, %v307
      %v324 = vpack.c.b16 %v310, %v309
      %v325 = vpack.c.b16 %v312, %v311
      %v326 = vpack.c.b16 %v314, %v313
      %v327 = vpack.c.b16 %v316, %v315
      %v328 = vpack.c.b16 %v318, %v317
      %v329 = vpack.c.b16 %v320, %v319
      %v330 = vpack.c.b16 %v322, %v321
      %339 = vmatprep.subr.bf16.mxu0 0
      %340 = vmatpush1.bf16.msra.mxu0 %v323
      %341 = vmatprep.subr.bf16.mxu0 0
      %342 = vmatpush1.bf16.msra.mxu0 %v324
      %343 = vmatprep.subr.bf16.mxu0 0
      %344 = vmatpush1.bf16.msra.mxu0 %v325
      %345 = vmatprep.subr.bf16.mxu0 0
      %346 = vmatpush1.bf16.msra.mxu0 %v326
      %347 = vmatprep.subr.bf16.mxu0 0
      %348 = vmatpush1.bf16.msra.mxu0 %v327
      %349 = vmatprep.subr.bf16.mxu0 0
      %350 = vmatpush1.bf16.msra.mxu0 %v328
      %351 = vmatprep.subr.bf16.mxu0 0
      %352 = vmatpush1.bf16.msra.mxu0 %v329
      %353 = vmatprep.subr.bf16.mxu0 0
      %354 = vmatpush1.bf16.msra.mxu0 %v330
      %355 = vmatprep.subr.bf16.mxu0 0
      %356 = vmatpush1.bf16.msra.mxu0 0
      %357 = vmatprep.subr.bf16.mxu0 0
      %358 = vmatpush1.bf16.msra.mxu0 0
      %359 = vmatprep.subr.bf16.mxu0 0
      %360 = vmatpush1.bf16.msra.mxu0 0
      %361 = vmatprep.subr.bf16.mxu0 0
      %362 = vmatpush1.bf16.msra.mxu0 0
      %363 = vmatprep.subr.bf16.mxu0 0
      %364 = vmatpush1.bf16.msra.mxu0 0
      %365 = vmatprep.subr.bf16.mxu0 0
      %366 = vmatpush1.bf16.msra.mxu0 0
      %367 = vmatprep.subr.bf16.mxu0 0
      %368 = vmatpush1.bf16.msra.mxu0 0
      %369 = vmatprep.subr.bf16.mxu0 0
      %370 = vmatpush1.bf16.msra.mxu0 0
      %371 = vmatprep.mubr.bf16.mxu0 0
      %372 = vmatmul.mubr.bf16.gmra.mrb[0].mxu0 %v283
      %v373 = vpop.f32.mrb[0].mxu0
      %v374 = vadd.f32 0.0, %v373
      %v375 = vpop.f32.mrb[0].mxu0
      %v376 = vpop.f32.mrb[0].mxu0
      %v377 = vadd.f32 0.0, %v376
      %v378 = vpop.f32.mrb[0].mxu0
      %379 = vmatprep.mubr.bf16.mxu0 0
      %380 = vmatmul.mubr.bf16.gmra.mrb[0].mxu0 %v284
      %v381 = vpop.f32.mrb[0].mxu0
      %v382 = vadd.f32 0.0, %v381
      %v383 = vpop.f32.mrb[0].mxu0
      %v384 = vpop.f32.mrb[0].mxu0
      %v385 = vadd.f32 0.0, %v384
      %v386 = vpop.f32.mrb[0].mxu0
      %387 = vmatprep.mubr.bf16.mxu0 0
      %388 = vmatmul.mubr.bf16.gmra.mrb[0].mxu0 %v285
      %v389 = vpop.f32.mrb[0].mxu0
      %v390 = vadd.f32 0.0, %v389
      %v391 = vpop.f32.mrb[0].mxu0
      %v392 = vpop.f32.mrb[0].mxu0
      %v393 = vadd.f32 0.0, %v392
      %v394 = vpop.f32.mrb[0].mxu0
      %395 = vmatprep.mubr.bf16.mxu0 0
      %396 = vmatmul.mubr.bf16.gmra.mrb[0].mxu0 %v286
      %v397 = vpop.f32.mrb[0].mxu0
      %v398 = vadd.f32 0.0, %v397
      %v399 = vpop.f32.mrb[0].mxu0
      %v400 = vpop.f32.mrb[0].mxu0
      %v401 = vadd.f32 0.0, %v400
      %v402 = vpop.f32.mrb[0].mxu0
      %403 = vdwg.mxu0
      %v404 = vpack.c.bf16 %v377, %v374
      %v405 = vpack.c.bf16 %v385, %v382
      %v406 = vpack.c.bf16 %v393, %v390
      %v407 = vpack.c.bf16 %v401, %v398
      %v412 = vunpack.c.l.b16 %v404
      %v413 = vunpack.c.h.b16 %v404
      %v414 = vunpack.c.l.b16 %v405
      %v415 = vunpack.c.h.b16 %v405
      %v416 = vunpack.c.l.b16 %v406
      %v417 = vunpack.c.h.b16 %v406
      %v418 = vunpack.c.l.b16 %v407
      %v419 = vunpack.c.h.b16 %v407
      %v420 = vpack.c.b16 %v412, %v412
      %v421 = vpack.c.b16 %v413, %v413
      %v422 = vpack.c.b16 %v414, %v414
      %v423 = vpack.c.b16 %v415, %v415
      %v424 = vpack.c.b16 %v416, %v416
      %v425 = vpack.c.b16 %v417, %v417
      %v426 = vpack.c.b16 %v418, %v418
      %v427 = vpack.c.b16 %v419, %v419
      %436 = vst [vmem:[%s233] sm:$0xf] %v420
      %437 = vst [vmem:[%s233 + $0x4] sm:$0xf] %v421
      %438 = vst [vmem:[%s233 + $0x8] sm:$0xf] %v422
      %439 = vst [vmem:[%s233 + $0xc] sm:$0xf] %v423
      %440 = vst [vmem:[%s233 + $0x10] sm:$0xf] %v424
      %441 = vst [vmem:[%s233 + $0x14] sm:$0xf] %v425
      %442 = vst [vmem:[%s233 + $0x18] sm:$0xf] %v426
      %443 = vst [vmem:[%s233 + $0x1c] sm:$0xf] %v427
      %v444 = vadd.f32 %v374, %v377
      %v445 = vadd.f32 %v444, %v382
      %v446 = vadd.f32 %v445, %v385
      %v447 = vadd.f32 %v446, %v390
      %v448 = vadd.f32 %v447, %v393
      %v449 = vadd.f32 %v448, %v398
      %v450 = vadd.f32 %v449, %v401
      %v451 = vrot.slane %v450, 4
      %v452 = vadd.f32 %v450, %v451
      %v453 = vrot.slane %v452, 2
      %v454 = vadd.f32 %v452, %v453
      %v455 = vrot.slane %v454, 1
      %v456 = vadd.f32 %v454, %v455
      %v457 = vmul.f32 %v374, %v374
      %v458 = vmul.f32 %v377, %v377
      %v459 = vmul.f32 %v382, %v382
      %v460 = vmul.f32 %v385, %v385
      %v461 = vmul.f32 %v390, %v390
      %v462 = vmul.f32 %v393, %v393
      %v463 = vmul.f32 %v398, %v398
      %v464 = vmul.f32 %v401, %v401
      %v465 = vadd.f32 %v457, %v458
      %v466 = vadd.f32 %v465, %v459
      %v467 = vadd.f32 %v466, %v460
      %v468 = vadd.f32 %v467, %v461
      %v469 = vadd.f32 %v468, %v462
      %v470 = vadd.f32 %v469, %v463
      %v471 = vadd.f32 %v470, %v464
      %v472 = vrot.slane %v471, 4
      %v473 = vadd.f32 %v471, %v472
      %v474 = vrot.slane %v473, 2
      %v475 = vadd.f32 %v473, %v474
      %v476 = vrot.slane %v475, 1
      %v477 = vadd.f32 %v475, %v476
      %p478 = scmp.eq.s32.totalorder %s21, 0
      // Predicated region
      $region29: #{fwd.4} parent=27 // pred_check
        %p479 = pneg %p478
      $region30: #{fwd.4} parent=27 // pred_check_branch
        %481 = sbr.rel (%p479) target = $region32
      $region31: #{fwd.4} parent=27 // pred_region
        %482 = vst [vmem:[%s238] sm:$0x1] %v456
        %483 = vst [vmem:[%s241] sm:$0x1] %v477
      $region32: #{fwd.4} parent=27 // pred_fallthru
        _
      %p484 = scmp.ne.s32.totalorder %s21, 0
      // Predicated region
      $region33: #{fwd.4} parent=27 // pred_check
        %p485 = pneg %p484
      $region34: #{fwd.4} parent=27 // pred_check_branch
        %487 = sbr.rel (%p485) target = $region36
      $region35: #{fwd.4} parent=27 // pred_region
        %v488 = vld [vmem:[%s238] sm:$0x1]
        %v489 = vadd.f32 %v488, %v456
        %490 = vst [vmem:[%s238] sm:$0x1] %v489
        %v491 = vld [vmem:[%s241] sm:$0x1]
        %v492 = vadd.f32 %v491, %v477
        %493 = vst [vmem:[%s241] sm:$0x1] %v492
      $region36: #{fwd.4} parent=27 // pred_fallthru
        _
      %s494 = sadd.s32 %s20, %s21
      %s495 = smul.u32 8, %s494
      %p496 = scmp.lt.s32.totalorder %s495, 15
      %s497 = scalar_select %p496, %s495, 15
      %s498 = smul.addr %s497, 4
      %s499 = scalar_lea.vmem %s2, %s498
      %p500 = scmp.lt.s32.totalorder %s20, 1
      %s501 = scalar_select %p500, %s20, 1
      %s502 = scalar_lea.vmem %s3, %s501
      %p503 = scmp.lt.s32.totalorder %s20, 1
      %s504 = scalar_select %p503, %s20, 1
      %s505 = scalar_lea.vmem %s4, %s504
      // Predicated region
      $region37: #{fwd.4} parent=27 // pred_check
        %p506 = pneg %p97
      $region38: #{fwd.4} parent=27 // pred_check_branch
        %508 = sbr.rel (%p506) target = $region40
      $region39: #{fwd.4} parent=27 // pred_region
        %s509 = sadd.s32 %s20, %s21
        %s510 = smul.u32 8, %s509
      $region40: #{fwd.4} parent=27 // pred_fallthru
        _
      // Predicated region
      $region41: #{fwd.4} parent=27 // pred_check
        %p511 = pneg %p123
      $region42: #{fwd.4} parent=27 // pred_check_branch
        %513 = sbr.rel (%p511) target = $region44
      $region43: #{fwd.4} parent=27 // pred_region
        _
      $region44: #{fwd.4} parent=27 // pred_fallthru
        _
      // Predicated region
      $region45: #{fwd.4} parent=27 // pred_check
        %p514 = pneg %p149
      $region46: #{fwd.4} parent=27 // pred_check_branch
        %516 = sbr.rel (%p514) target = $region48
      $region47: #{fwd.4} parent=27 // pred_region
        _
      $region48: #{fwd.4} parent=27 // pred_fallthru
        _
    $region28: #{fwd.4} parent=5 // pred_fallthru
      _
    %p517 = scmp.le.s32.totalorder 2, %s11
    // Predicated region
    $region49: #{fwd.4} parent=5 // pred_check
      %p518 = pneg %p517
    $region50: #{fwd.4} parent=5 // pred_check_branch
      %520 = sbr.rel (%p518) target = $region52
    $region51: #{fwd.4} parent=5 // pred_region
      %s521 = ssub.s32 %s11, 2
      // Predicated region
      $region53: #{fwd.4} parent=51 // pred_check
        %p522 = pneg %p103
      $region54: #{fwd.4} parent=51 // pred_check_branch
        %524 = sbr.rel (%p522) target = $region56
      $region55: #{fwd.4} parent=51 // pred_region
        %s525 = sadd.s32 %s22, %s23
        %s526 = smul.u32 8, %s525
        %p527 = scmp.lt.s32.totalorder %s526, 15
        %s528 = scalar_select %p527, %s526, 15
        %s529 = smul.addr %s528, 4
        %s530 = scalar_lea.vmem %s2, %s529
      $region56: #{fwd.4} parent=51 // pred_fallthru
        _
      // Predicated region
      $region57: #{fwd.4} parent=51 // pred_check
        %p531 = pneg %p129
      $region58: #{fwd.4} parent=51 // pred_check_branch
        %533 = sbr.rel (%p531) target = $region60
      $region59: #{fwd.4} parent=51 // pred_region
        %p534 = scmp.lt.s32.totalorder %s22, 1
        %s535 = scalar_select %p534, %s22, 1
        %s536 = scalar_lea.vmem %s3, %s535
      $region60: #{fwd.4} parent=51 // pred_fallthru
        _
      // Predicated region
      $region61: #{fwd.4} parent=51 // pred_check
        %p537 = pneg %p155
      $region62: #{fwd.4} parent=51 // pred_check_branch
        %539 = sbr.rel (%p537) target = $region64
      $region63: #{fwd.4} parent=51 // pred_region
        %p540 = scmp.lt.s32.totalorder %s22, 1
        %s541 = scalar_select %p540, %s22, 1
        %s542 = scalar_lea.vmem %s4, %s541
      $region64: #{fwd.4} parent=51 // pred_fallthru
        _
    $region52: #{fwd.4} parent=5 // pred_fallthru
      _
  $region6: #{fwd.4} parent=0 // loop_footer
    %s15 = sadd.s32 1, %s11
  $region7: #{fwd.4} parent=0 // loop_footer_branch
    %10 = sbr.rel target = $region3
  $region8: #{fwd.4} parent=0 // loop_exit
    _

// kernel: fwd.7
$region0: #{fwd.7}
  #allocation0 [shape = 'u32[]', space=smem, size = 0x4, offset = 0x4, fixed_abs, tag = 'smem constant byte address 0x4 - core index']
  #allocation1 [shape = 'u32[144,128]{1,0:T(1,128)}', space=vmem, size = 0x12000, scoped, tag = 'internal scratch']
  %s0 = inlined_call_operand.vmem [shape: bf16[128,128], index: 0, kind: input, shape index: {}]
  %s1 = inlined_call_operand.vmem [shape: bf16[128,128], index: 1, kind: input, shape index: {}]
  %s2 = inlined_call_operand.vmem [shape: f32[1,128], index: 2, kind: input, shape index: {}]
  %s3 = inlined_call_operand.vmem [shape: f32[1,128], index: 3, kind: input, shape index: {}]
  %s4 = inlined_call_operand.vmem [shape: f32[1,128], index: 4, kind: input, shape index: {}]
  %s5 = inlined_call_operand.vmem [shape: f32[1,128], index: 5, kind: input, shape index: {}]
  %s6 = inlined_call_operand.vmem [shape: f32[128,128], index: 6, kind: output, shape index: {}]
  %s7 = sld [smem:[#allocation0]]
  $region57: #{fwd.7} parent=0
    _
  %s9 = ssub.s32 1, %s7
  %s10 = scalar_select 0, %s9, %s7
  loop: start=0, step=1, limit=4
  $region2: #{fwd.7} parent=0 // loop_pre_header
    _
  $region3: #{fwd.7} parent=0 // loop_header
    %s12 = sphi 0, %s16
    %p13 = scmp.ge.s32.totalorder %s12, 4
    %s22 = sphi 0, %s24
    %s25 = sphi 0, %s22
    %s26 = sphi 0, %s25
    %s42 = sphi 0, %s26
    %s48 = sphi 0, %s50
    %s51 = sphi 0, %s48
    %s52 = sphi 0, %s51
    %s68 = sphi 0, %s52
    %s72 = sphi 0, %s72
    %s74 = sphi 0, %s72
    %s75 = sphi 0, %s74
    %s89 = sphi 0, %s75
    %s93 = sphi 0, %s93
    %s95 = sphi 0, %s93
    %s96 = sphi 0, %s95
    %s110 = sphi 0, %s96
    %s114 = sphi 0, %s114
    %s116 = sphi 0, %s114
    %s117 = sphi 0, %s116
    %s131 = sphi 0, %s117
    %s135 = sphi 0, %s135
    %s137 = sphi 0, %s135
    %s138 = sphi 0, %s137
    %s152 = sphi 0, %s138
    %s158 = sphi 0, %s160
    %s161 = sphi 0, %s158
    %s162 = sphi 0, %s161
    %s178 = sphi 0, %s162
  $region4: #{fwd.7} parent=0 // loop_header_branch
    %15 = sbr.rel (%p13) target = $region8
  $region5: #{fwd.7} parent=0 // loop_body
    %s17 = ssub.s32 %s12, 1
    %s18 = ssub.s32 %s12, 2
    %s19 = sadd.s32 %s12, 1
    %s20 = ssub.s32 %s12, %s19
    %p21 = scmp.eq.s32.totalorder %s20, 0
    %s23 = sadd.s32 %s22, 1
    %s24 = scalar_select %p21, %s22, %s23
    %p27 = pneg %p21
    %p28 = scmp.eq.s32.totalorder %s12, 1
    %p29 = por %p27, %p28
    %p30 = scmp.ne.s32.totalorder %s22, %s25
    %p31 = scmp.eq.s32.totalorder %s12, 0
    %p32 = por %p30, %p31
    %p33 = scmp.ne.s32.totalorder %s22, %s25
    %p34 = scmp.eq.s32.totalorder %s17, 1
    %p35 = por %p33, %p34
    %p36 = scmp.ne.s32.totalorder %s25, %s26
    %p37 = scmp.eq.s32.totalorder %s17, 0
    %p38 = por %p36, %p37
    %p39 = scmp.ne.s32.totalorder %s25, %s26
    %p40 = scmp.eq.s32.totalorder %s18, 1
    %p41 = por %p39, %p40
    %p43 = scmp.ne.s32.totalorder %s26, %s42
    %p44 = scmp.eq.s32.totalorder %s18, 0
    %p45 = por %p43, %p44
    %s46 = ssub.s32 %s12, %s19
    %p47 = scmp.eq.s32.totalorder %s46, 0
    %s49 = sadd.s32 %s48, 1
    %s50 = scalar_select %p47, %s48, %s49
    %p53 = pneg %p47
    %p54 = scmp.eq.s32.totalorder %s12, 1
    %p55 = por %p53, %p54
    %p56 = scmp.ne.s32.totalorder %s48, %s51
    %p57 = scmp.eq.s32.totalorder %s12, 0
    %p58 = por %p56, %p57
    %p59 = scmp.ne.s32.totalorder %s48, %s51
    %p60 = scmp.eq.s32.totalorder %s17, 1
    %p61 = por %p59, %p60
    %p62 = scmp.ne.s32.totalorder %s51, %s52
    %p63 = scmp.eq.s32.totalorder %s17, 0
    %p64 = por %p62, %p63
    %p65 = scmp.ne.s32.totalorder %s51, %s52
    %p66 = scmp.eq.s32.totalorder %s18, 1
    %p67 = por %p65, %p66
    %p69 = scmp.ne.s32.totalorder %s52, %s68
    %p70 = scmp.eq.s32.totalorder %s18, 0
    %p71 = por %p69, %p70
    %s73 = sadd.s32 %s72, 1
    %p76 = scmp.eq.s32.totalorder %s12, 1
    %p77 = scmp.ne.s32.totalorder %s72, %s74
    %p78 = scmp.eq.s32.totalorder %s12, 0
    %p79 = por %p77, %p78
    %p80 = scmp.ne.s32.totalorder %s72, %s74
    %p81 = scmp.eq.s32.totalorder %s17, 1
    %p82 = por %p80, %p81
    %p83 = scmp.ne.s32.totalorder %s74, %s75
    %p84 = scmp.eq.s32.totalorder %s17, 0
    %p85 = por %p83, %p84
    %p86 = scmp.ne.s32.totalorder %s74, %s75
    %p87 = scmp.eq.s32.totalorder %s18, 1
    %p88 = por %p86, %p87
    %p90 = scmp.ne.s32.totalorder %s75, %s89
    %p91 = scmp.eq.s32.totalorder %s18, 0
    %p92 = por %p90, %p91
    %s94 = sadd.s32 %s93, 1
    %p97 = scmp.eq.s32.totalorder %s12, 1
    %p98 = scmp.ne.s32.totalorder %s93, %s95
    %p99 = scmp.eq.s32.totalorder %s12, 0
    %p100 = por %p98, %p99
    %p101 = scmp.ne.s32.totalorder %s93, %s95
    %p102 = scmp.eq.s32.totalorder %s17, 1
    %p103 = por %p101, %p102
    %p104 = scmp.ne.s32.totalorder %s95, %s96
    %p105 = scmp.eq.s32.totalorder %s17, 0
    %p106 = por %p104, %p105
    %p107 = scmp.ne.s32.totalorder %s95, %s96
    %p108 = scmp.eq.s32.totalorder %s18, 1
    %p109 = por %p107, %p108
    %p111 = scmp.ne.s32.totalorder %s96, %s110
    %p112 = scmp.eq.s32.totalorder %s18, 0
    %p113 = por %p111, %p112
    %s115 = sadd.s32 %s114, 1
    %p118 = scmp.eq.s32.totalorder %s12, 1
    %p119 = scmp.ne.s32.totalorder %s114, %s116
    %p120 = scmp.eq.s32.totalorder %s12, 0
    %p121 = por %p119, %p120
    %p122 = scmp.ne.s32.totalorder %s114, %s116
    %p123 = scmp.eq.s32.totalorder %s17, 1
    %p124 = por %p122, %p123
    %p125 = scmp.ne.s32.totalorder %s116, %s117
    %p126 = scmp.eq.s32.totalorder %s17, 0
    %p127 = por %p125, %p126
    %p128 = scmp.ne.s32.totalorder %s116, %s117
    %p129 = scmp.eq.s32.totalorder %s18, 1
    %p130 = por %p128, %p129
    %p132 = scmp.ne.s32.totalorder %s117, %s131
    %p133 = scmp.eq.s32.totalorder %s18, 0
    %p134 = por %p132, %p133
    %s136 = sadd.s32 %s135, 1
    %p139 = scmp.eq.s32.totalorder %s12, 1
    %p140 = scmp.ne.s32.totalorder %s135, %s137
    %p141 = scmp.eq.s32.totalorder %s12, 0
    %p142 = por %p140, %p141
    %p143 = scmp.ne.s32.totalorder %s135, %s137
    %p144 = scmp.eq.s32.totalorder %s17, 1
    %p145 = por %p143, %p144
    %p146 = scmp.ne.s32.totalorder %s137, %s138
    %p147 = scmp.eq.s32.totalorder %s17, 0
    %p148 = por %p146, %p147
    %p149 = scmp.ne.s32.totalorder %s137, %s138
    %p150 = scmp.eq.s32.totalorder %s18, 1
    %p151 = por %p149, %p150
    %p153 = scmp.ne.s32.totalorder %s138, %s152
    %p154 = scmp.eq.s32.totalorder %s18, 0
    %p155 = por %p153, %p154
    %s156 = ssub.s32 %s12, %s19
    %p157 = scmp.eq.s32.totalorder %s156, 0
    %s159 = sadd.s32 %s158, 1
    %s160 = scalar_select %p157, %s158, %s159
    %p163 = pneg %p157
    %p164 = scmp.eq.s32.totalorder %s12, 1
    %p165 = por %p163, %p164
    %p166 = scmp.ne.s32.totalorder %s158, %s161
    %p167 = scmp.eq.s32.totalorder %s12, 0
    %p168 = por %p166, %p167
    %p169 = scmp.ne.s32.totalorder %s158, %s161
    %p170 = scmp.eq.s32.totalorder %s17, 1
    %p171 = por %p169, %p170
    %p172 = scmp.ne.s32.totalorder %s161, %s162
    %p173 = scmp.eq.s32.totalorder %s17, 0
    %p174 = por %p172, %p173
    %p175 = scmp.ne.s32.totalorder %s161, %s162
    %p176 = scmp.eq.s32.totalorder %s18, 1
    %p177 = por %p175, %p176
    %p179 = scmp.ne.s32.totalorder %s162, %s178
    %p180 = scmp.eq.s32.totalorder %s18, 0
    %p181 = por %p179, %p180
    %p182 = scmp.le.s32.totalorder 1, %s12
    %p183 = scmp.lt.s32.totalorder %s12, 3
    %p184 = pnand %p182, %p183
    %p185 = pneg %p184
    // Predicated region
    $region9: #{fwd.7} parent=5 // pred_check
      _
    $region10: #{fwd.7} parent=5 // pred_check_branch
      %187 = sbr.rel (%p184) target = $region12
    $region11: #{fwd.7} parent=5 // pred_region
      %s188 = ssub.s32 %s12, 1
      // Predicated region
      $region13: #{fwd.7} parent=11 // pred_check
        %p189 = pneg %p85
      $region14: #{fwd.7} parent=11 // pred_check_branch
        %191 = sbr.rel (%p189) target = $region16
      $region15: #{fwd.7} parent=11 // pred_region
        _
      $region16: #{fwd.7} parent=11 // pred_fallthru
        _
      // Predicated region
      $region17: #{fwd.7} parent=11 // pred_check
        %p192 = pneg %p106
      $region18: #{fwd.7} parent=11 // pred_check_branch
        %194 = sbr.rel (%p192) target = $region20
      $region19: #{fwd.7} parent=11 // pred_region
        _
      $region20: #{fwd.7} parent=11 // pred_fallthru
        _
      // Predicated region
      $region21: #{fwd.7} parent=11 // pred_check
        %p195 = pneg %p127
      $region22: #{fwd.7} parent=11 // pred_check_branch
        %197 = sbr.rel (%p195) target = $region24
      $region23: #{fwd.7} parent=11 // pred_region
        _
      $region24: #{fwd.7} parent=11 // pred_fallthru
        _
      // Predicated region
      $region25: #{fwd.7} parent=11 // pred_check
        %p198 = pneg %p148
      $region26: #{fwd.7} parent=11 // pred_check_branch
        %200 = sbr.rel (%p198) target = $region28
      $region27: #{fwd.7} parent=11 // pred_region
        _
      $region28: #{fwd.7} parent=11 // pred_fallthru
        _
    $region12: #{fwd.7} parent=5 // pred_fallthru
      _
    %p201 = scmp.lt.s32.totalorder %s12, 2
    // Predicated region
    $region29: #{fwd.7} parent=5 // pred_check
      %p202 = pneg %p201
    $region30: #{fwd.7} parent=5 // pred_check_branch
      %204 = sbr.rel (%p202) target = $region32
    $region31: #{fwd.7} parent=5 // pred_region
      // Predicated region
      $region33: #{fwd.7} parent=31 // pred_check
        %p205 = pneg %p32
      $region34: #{fwd.7} parent=31 // pred_check_branch
        %207 = sbr.rel (%p205) target = $region36
      $region35: #{fwd.7} parent=31 // pred_region
        %s208 = smul.u32 8, %s12
        %p209 = scmp.lt.s32.totalorder %s208, 15
        %s210 = scalar_select %p209, %s208, 15
        %s211 = smul.addr %s210, 4
        %s212 = scalar_lea.vmem %s0, %s211
        %s213 = smul.u32 8, %s12
      $region36: #{fwd.7} parent=31 // pred_fallthru
        _
      // Predicated region
      $region37: #{fwd.7} parent=31 // pred_check
        %p214 = pneg %p58
      $region38: #{fwd.7} parent=31 // pred_check_branch
        %216 = sbr.rel (%p214) target = $region40
      $region39: #{fwd.7} parent=31 // pred_region
        %s217 = smul.u32 8, %s12
        %p218 = scmp.lt.s32.totalorder %s217, 15
        %s219 = scalar_select %p218, %s217, 15
        %s220 = smul.addr %s219, 4
        %s221 = scalar_lea.vmem %s1, %s220
        %s222 = smul.u32 8, %s12
      $region40: #{fwd.7} parent=31 // pred_fallthru
        _
    $region32: #{fwd.7} parent=5 // pred_fallthru
      _
    %p223 = scmp.le.s32.totalorder 1, %s12
    %p224 = scmp.lt.s32.totalorder %s12, 3
    %p225 = pnand %p223, %p224
    %p226 = pneg %p225
    // Predicated region
    $region41: #{fwd.7} parent=5 // pred_check
      _
    $region42: #{fwd.7} parent=5 // pred_check_branch
      %228 = sbr.rel (%p225) target = $region44
    $region43: #{fwd.7} parent=5 // pred_region
      %s229 = ssub.s32 %s12, 1
      %s230 = smul.u32 8, %s17
      %p231 = scmp.lt.s32.totalorder %s230, 15
      %s232 = scalar_select %p231, %s230, 15
      %s233 = smul.addr %s232, 4
      %s234 = scalar_lea.vmem %s0, %s233
      %p235 = pneg %p38
      %p236 = pneg %p35
      %s237 = smul.u32 8, %s17
      %p238 = scmp.lt.s32.totalorder %s237, 15
      %s239 = scalar_select %p238, %s237, 15
      %s240 = smul.addr %s239, 4
      %s241 = scalar_lea.vmem %s1, %s240
      %p242 = pneg %p64
      %p243 = pneg %p61
      %p244 = pneg %p85
      %p245 = pneg %p82
      %p246 = pneg %p106
      %p247 = pneg %p103
      %p248 = pneg %p127
      %p249 = pneg %p124
      %p250 = pneg %p148
      %p251 = pneg %p145
      %p252 = pneg %p174
      %p253 = pneg %p171
      %s254 = smul.u32 8, %s17
      %p255 = scmp.lt.s32.totalorder %s254, 15
      %s256 = scalar_select %p255, %s254, 15
      %s257 = smul.addr %s256, 8
      %s258 = scalar_lea.vmem %s6, %s257
      %s259 = smul.u32 8, %s17
      %p260 = scmp.lt.s32.totalorder %s259, 15
      %s261 = scalar_select %p260, %s259, 15
      %s262 = smul.addr %s261, 4
      %s263 = scalar_lea.vmem %s0, %s262
      %s264 = smul.u32 8, %s17
      %s265 = smul.u32 8, %s17
      %p266 = scmp.lt.s32.totalorder %s265, 15
      %s267 = scalar_select %p266, %s265, 15
      %s268 = smul.addr %s267, 4
      %s269 = scalar_lea.vmem %s1, %s268
      %s270 = smul.u32 8, %s17
      %s271 = smul.u32 8, %s17
      %p272 = scmp.lt.s32.totalorder %s271, 15
      %s273 = scalar_select %p272, %s271, 15
      %s274 = smul.addr %s273, 8
      %s275 = scalar_lea.vmem %s6, %s274
      %s276 = smul.u32 8, %s17
      %v277 = vld [vmem:[%s263] sm:$0xf]
      %v278 = vld [vmem:[%s263 + $0x4] sm:$0xf]
      %v279 = vld [vmem:[%s263 + $0x8] sm:$0xf]
      %v280 = vld [vmem:[%s263 + $0xc] sm:$0xf]
      %v281 = vld [vmem:[%s263 + $0x10] sm:$0xf]
      %v282 = vld [vmem:[%s263 + $0x14] sm:$0xf]
      %v283 = vld [vmem:[%s263 + $0x18] sm:$0xf]
      %v284 = vld [vmem:[%s263 + $0x1c] sm:$0xf]
      %v285 = vunpack.c.l.bf16 %v277
      %v286 = vunpack.c.l.bf16 %v278
      %v287 = vunpack.c.l.bf16 %v279
      %v288 = vunpack.c.l.bf16 %v280
      %v289 = vunpack.c.l.bf16 %v281
      %v290 = vunpack.c.l.bf16 %v282
      %v291 = vunpack.c.l.bf16 %v283
      %v292 = vunpack.c.l.bf16 %v284
      %v293 = vld [vmem:[%s2] sm:$0x1]
      %v295 = vlaneseq
      %v296 = vshrl.u32 %v295, 7
      %v297 = vsub.s32 0, %v296
      %v298 = vrot.slane %v293, %v297
      %v300 = vmul.f32 %v285, %v298
      %v301 = vmul.f32 %v286, %v298
      %v302 = vmul.f32 %v287, %v298
      %v303 = vmul.f32 %v288, %v298
      %v304 = vmul.f32 %v289, %v298
      %v305 = vmul.f32 %v290, %v298
      %v306 = vmul.f32 %v291, %v298
      %v307 = vmul.f32 %v292, %v298
      %v308 = vld [vmem:[%s3] sm:$0x1]
      %v310 = vlaneseq
      %v311 = vshrl.u32 %v310, 7
      %v312 = vsub.s32 0, %v311
      %v313 = vrot.slane %v308, %v312
      %v315 = vadd.f32 %v300, %v313
      %v316 = vadd.f32 %v301, %v313
      %v317 = vadd.f32 %v302, %v313
      %v318 = vadd.f32 %v303, %v313
      %v319 = vadd.f32 %v304, %v313
      %v320 = vadd.f32 %v305, %v313
      %v321 = vadd.f32 %v306, %v313
      %v322 = vadd.f32 %v307, %v313
      %v323 = vld [vmem:[%s269] sm:$0xf]
      %v324 = vld [vmem:[%s269 + $0x4] sm:$0xf]
      %v325 = vld [vmem:[%s269 + $0x8] sm:$0xf]
      %v326 = vld [vmem:[%s269 + $0xc] sm:$0xf]
      %v327 = vld [vmem:[%s269 + $0x10] sm:$0xf]
      %v328 = vld [vmem:[%s269 + $0x14] sm:$0xf]
      %v329 = vld [vmem:[%s269 + $0x18] sm:$0xf]
      %v330 = vld [vmem:[%s269 + $0x1c] sm:$0xf]
      %v331 = vunpack.c.l.bf16 %v323
      %v332 = vunpack.c.l.bf16 %v324
      %v333 = vunpack.c.l.bf16 %v325
      %v334 = vunpack.c.l.bf16 %v326
      %v335 = vunpack.c.l.bf16 %v327
      %v336 = vunpack.c.l.bf16 %v328
      %v337 = vunpack.c.l.bf16 %v329
      %v338 = vunpack.c.l.bf16 %v330
      %v339 = vld [vmem:[%s4] sm:$0x1]
      %v341 = vlaneseq
      %v342 = vshrl.u32 %v341, 7
      %v343 = vsub.s32 0, %v342
      %v344 = vrot.slane %v339, %v343
      %v346 = vmul.f32 %v331, %v344
      %v347 = vmul.f32 %v332, %v344
      %v348 = vmul.f32 %v333, %v344
      %v349 = vmul.f32 %v334, %v344
      %v350 = vmul.f32 %v335, %v344
      %v351 = vmul.f32 %v336, %v344
      %v352 = vmul.f32 %v337, %v344
      %v353 = vmul.f32 %v338, %v344
      %v354 = vld [vmem:[%s5] sm:$0x1]
      %v356 = vlaneseq
      %v357 = vshrl.u32 %v356, 7
      %v358 = vsub.s32 0, %v357
      %v359 = vrot.slane %v354, %v358
      %v361 = vadd.f32 %v346, %v359
      %v362 = vadd.f32 %v347, %v359
      %v363 = vadd.f32 %v348, %v359
      %v364 = vadd.f32 %v349, %v359
      %v365 = vadd.f32 %v350, %v359
      %v366 = vadd.f32 %v351, %v359
      %v367 = vadd.f32 %v352, %v359
      %v368 = vadd.f32 %v353, %v359
      %v369 = vadd.f32 %v315, %v361
      %v370 = vadd.f32 %v316, %v362
      %v371 = vadd.f32 %v317, %v363
      %v372 = vadd.f32 %v318, %v364
      %v373 = vadd.f32 %v319, %v365
      %v374 = vadd.f32 %v320, %v366
      %v375 = vadd.f32 %v321, %v367
      %v376 = vadd.f32 %v322, %v368
      %v377 = vmax.f32 %v369, 0.0
      %v378 = vmax.f32 %v370, 0.0
      %v379 = vmax.f32 %v371, 0.0
      %v380 = vmax.f32 %v372, 0.0
      %v381 = vmax.f32 %v373, 0.0
      %v382 = vmax.f32 %v374, 0.0
      %v383 = vmax.f32 %v375, 0.0
      %v384 = vmax.f32 %v376, 0.0
      %385 = vst [vmem:[%s275] sm:$0xff] %v377
      %386 = vst [vmem:[%s275 + $0x8] sm:$0xff] %v378
      %387 = vst [vmem:[%s275 + $0x10] sm:$0xff] %v379
      %388 = vst [vmem:[%s275 + $0x18] sm:$0xff] %v380
      %389 = vst [vmem:[%s275 + $0x20] sm:$0xff] %v381
      %390 = vst [vmem:[%s275 + $0x28] sm:$0xff] %v382
      %391 = vst [vmem:[%s275 + $0x30] sm:$0xff] %v383
      %392 = vst [vmem:[%s275 + $0x38] sm:$0xff] %v384
      %s393 = smul.u32 8, %s17
      %p394 = scmp.lt.s32.totalorder %s393, 15
      %s395 = scalar_select %p394, %s393, 15
      %s396 = smul.addr %s395, 8
      %s397 = scalar_lea.vmem %s6, %s396
      // Predicated region
      $region45: #{fwd.7} parent=43 // pred_check
        %p398 = pneg %p171
      $region46: #{fwd.7} parent=43 // pred_check_branch
        %400 = sbr.rel (%p398) target = $region48
      $region47: #{fwd.7} parent=43 // pred_region
        %s401 = smul.u32 8, %s17
      $region48: #{fwd.7} parent=43 // pred_fallthru
        _
    $region44: #{fwd.7} parent=5 // pred_fallthru
      _
    %p402 = scmp.le.s32.totalorder 2, %s12
    // Predicated region
    $region49: #{fwd.7} parent=5 // pred_check
      %p403 = pneg %p402
    $region50: #{fwd.7} parent=5 // pred_check_branch
      %405 = sbr.rel (%p403) target = $region52
    $region51: #{fwd.7} parent=5 // pred_region
      %s406 = ssub.s32 %s12, 2
      // Predicated region
      $region53: #{fwd.7} parent=51 // pred_check
        %p407 = pneg %p177
      $region54: #{fwd.7} parent=51 // pred_check_branch
        %409 = sbr.rel (%p407) target = $region56
      $region55: #{fwd.7} parent=51 // pred_region
        %s410 = smul.u32 8, %s18
        %p411 = scmp.lt.s32.totalorder %s410, 15
        %s412 = scalar_select %p411, %s410, 15
        %s413 = smul.addr %s412, 8
        %s414 = scalar_lea.vmem %s6, %s413
      $region56: #{fwd.7} parent=51 // pred_fallthru
        _
    $region52: #{fwd.7} parent=5 // pred_fallthru
      _
  $region6: #{fwd.7} parent=0 // loop_footer
    %s16 = sadd.s32 1, %s12
  $region7: #{fwd.7} parent=0 // loop_footer_branch
    %11 = sbr.rel target = $region3
  $region8: #{fwd.7} parent=0 // loop_exit
    _

// kernel: fwd.6
$region0: #{fwd.6}
  #allocation0 [shape = 'u32[]', space=smem, size = 0x4, offset = 0x4, fixed_abs, tag = 'smem constant byte address 0x4 - core index']
  #allocation1 [shape = 'u32[144,128]{1,0:T(1,128)}', space=vmem, size = 0x12000, scoped, tag = 'internal scratch']
  %s0 = inlined_call_operand.vmem [shape: bf16[128,128], index: 0, kind: input, shape index: {}]
  %s1 = inlined_call_operand.vmem [shape: bf16[128,128], index: 1, kind: input, shape index: {}]
  %s2 = inlined_call_operand.vmem [shape: bf16[128,128], index: 2, kind: input, shape index: {}]
  %s3 = inlined_call_operand.vmem [shape: bf16[128,128], index: 3, kind: input, shape index: {}]
  %s4 = inlined_call_operand.vmem [shape: bf16[128,128], index: 4, kind: output, shape index: {0}]
  %s5 = inlined_call_operand.vmem [shape: bf16[128,128], index: 5, kind: output, shape index: {1}]
  %s6 = inlined_call_operand.vmem [shape: f32[2,1,128], index: 6, kind: output, shape index: {2}]
  %s7 = inlined_call_operand.vmem [shape: f32[2,1,128], index: 7, kind: output, shape index: {3}]
  %s8 = inlined_call_operand.vmem [shape: f32[2,1,128], index: 8, kind: output, shape index: {4}]
  %s9 = inlined_call_operand.vmem [shape: f32[2,1,128], index: 9, kind: output, shape index: {5}]
  %10 = xla_tuple %s4, %s5, %s6, %s7, %s8, %s9
  %s11 = sld [smem:[#allocation0]]
  $region97: #{fwd.6} parent=0
    _
  %s13 = ssub.s32 1, %s11
  %s14 = scalar_select 0, %s13, %s11
  loop: start=0, step=1, limit=4
  $region2: #{fwd.6} parent=0 // loop_pre_header
    _
  $region3: #{fwd.6} parent=0 // loop_header
    %s16 = sphi 0, %s20
    %p17 = scmp.ge.s32.totalorder %s16, 4
    %s23 = sphi 0, %s35
    %s24 = sphi 0, %s31
    %s25 = sphi 0, %s23
    %s26 = sphi 0, %s24
    %s27 = sphi 0, %s25
    %s28 = sphi 0, %s26
    %s40 = sphi 0, %s42
    %s43 = sphi 0, %s40
    %s44 = sphi 0, %s43
    %s60 = sphi 0, %s44
    %s68 = sphi 0, %s70
    %s71 = sphi 0, %s68
    %s72 = sphi 0, %s71
    %s88 = sphi 0, %s72
    %s92 = sphi 0, %s92
    %s94 = sphi 0, %s92
    %s95 = sphi 0, %s94
    %s109 = sphi 0, %s95
    %s113 = sphi 0, %s113
    %s115 = sphi 0, %s113
    %s116 = sphi 0, %s115
    %s130 = sphi 0, %s116
    %s138 = sphi 0, %s140
    %s141 = sphi 0, %s138
    %s142 = sphi 0, %s141
    %s158 = sphi 0, %s142
    %s166 = sphi 0, %s168
    %s169 = sphi 0, %s166
    %s170 = sphi 0, %s169
    %s186 = sphi 0, %s170
    %s192 = sphi 0, %s194
    %s195 = sphi 0, %s192
    %s196 = sphi 0, %s195
    %s212 = sphi 0, %s196
    %s218 = sphi 0, %s220
    %s221 = sphi 0, %s218
    %s222 = sphi 0, %s221
    %s238 = sphi 0, %s222
    %s244 = sphi 0, %s246
    %s247 = sphi 0, %s244
    %s248 = sphi 0, %s247
    %s264 = sphi 0, %s248
    %s270 = sphi 0, %s272
    %s273 = sphi 0, %s270
    %s274 = sphi 0, %s273
    %s290 = sphi 0, %s274
  $region4: #{fwd.6} parent=0 // loop_header_branch
    %19 = sbr.rel (%p17) target = $region8
  $region5: #{fwd.6} parent=0 // loop_body
    %s21 = ssub.s32 %s16, 1
    %s22 = ssub.s32 %s16, 2
    %s29 = sadd.s32 1, %s24
    %p30 = scmp.ge.s32.totalorder %s29, 1
    %s31 = scalar_select %p30, 0, %s29
    %s32 = sadd.s32 1, %s23
    %s33 = scalar_select %p30, %s32, %s23
    %p34 = scmp.ge.s32.totalorder %s33, 2
    %s35 = scalar_select %p34, 0, %s33
    %s36 = sadd.s32 %s23, %s24
    %s37 = sadd.s32 %s35, %s31
    %s38 = ssub.s32 %s36, %s37
    %p39 = scmp.eq.s32.totalorder %s38, 0
    %s41 = sadd.s32 %s40, 1
    %s42 = scalar_select %p39, %s40, %s41
    %p45 = pneg %p39
    %p46 = scmp.eq.s32.totalorder %s16, 1
    %p47 = por %p45, %p46
    %p48 = scmp.ne.s32.totalorder %s40, %s43
    %p49 = scmp.eq.s32.totalorder %s16, 0
    %p50 = por %p48, %p49
    %p51 = scmp.ne.s32.totalorder %s40, %s43
    %p52 = scmp.eq.s32.totalorder %s21, 1
    %p53 = por %p51, %p52
    %p54 = scmp.ne.s32.totalorder %s43, %s44
    %p55 = scmp.eq.s32.totalorder %s21, 0
    %p56 = por %p54, %p55
    %p57 = scmp.ne.s32.totalorder %s43, %s44
    %p58 = scmp.eq.s32.totalorder %s22, 1
    %p59 = por %p57, %p58
    %p61 = scmp.ne.s32.totalorder %s44, %s60
    %p62 = scmp.eq.s32.totalorder %s22, 0
    %p63 = por %p61, %p62
    %s64 = sadd.s32 %s23, %s24
    %s65 = sadd.s32 %s35, %s31
    %s66 = ssub.s32 %s64, %s65
    %p67 = scmp.eq.s32.totalorder %s66, 0
    %s69 = sadd.s32 %s68, 1
    %s70 = scalar_select %p67, %s68, %s69
    %p73 = pneg %p67
    %p74 = scmp.eq.s32.totalorder %s16, 1
    %p75 = por %p73, %p74
    %p76 = scmp.ne.s32.totalorder %s68, %s71
    %p77 = scmp.eq.s32.totalorder %s16, 0
    %p78 = por %p76, %p77
    %p79 = scmp.ne.s32.totalorder %s68, %s71
    %p80 = scmp.eq.s32.totalorder %s21, 1
    %p81 = por %p79, %p80
    %p82 = scmp.ne.s32.totalorder %s71, %s72
    %p83 = scmp.eq.s32.totalorder %s21, 0
    %p84 = por %p82, %p83
    %p85 = scmp.ne.s32.totalorder %s71, %s72
    %p86 = scmp.eq.s32.totalorder %s22, 1
    %p87 = por %p85, %p86
    %p89 = scmp.ne.s32.totalorder %s72, %s88
    %p90 = scmp.eq.s32.totalorder %s22, 0
    %p91 = por %p89, %p90
    %s93 = sadd.s32 %s92, 1
    %p96 = scmp.eq.s32.totalorder %s16, 1
    %p97 = scmp.ne.s32.totalorder %s92, %s94
    %p98 = scmp.eq.s32.totalorder %s16, 0
    %p99 = por %p97, %p98
    %p100 = scmp.ne.s32.totalorder %s92, %s94
    %p101 = scmp.eq.s32.totalorder %s21, 1
    %p102 = por %p100, %p101
    %p103 = scmp.ne.s32.totalorder %s94, %s95
    %p104 = scmp.eq.s32.totalorder %s21, 0
    %p105 = por %p103, %p104
    %p106 = scmp.ne.s32.totalorder %s94, %s95
    %p107 = scmp.eq.s32.totalorder %s22, 1
    %p108 = por %p106, %p107
    %p110 = scmp.ne.s32.totalorder %s95, %s109
    %p111 = scmp.eq.s32.totalorder %s22, 0
    %p112 = por %p110, %p111
    %s114 = sadd.s32 %s113, 1
    %p117 = scmp.eq.s32.totalorder %s16, 1
    %p118 = scmp.ne.s32.totalorder %s113, %s115
    %p119 = scmp.eq.s32.totalorder %s16, 0
    %p120 = por %p118, %p119
    %p121 = scmp.ne.s32.totalorder %s113, %s115
    %p122 = scmp.eq.s32.totalorder %s21, 1
    %p123 = por %p121, %p122
    %p124 = scmp.ne.s32.totalorder %s115, %s116
    %p125 = scmp.eq.s32.totalorder %s21, 0
    %p126 = por %p124, %p125
    %p127 = scmp.ne.s32.totalorder %s115, %s116
    %p128 = scmp.eq.s32.totalorder %s22, 1
    %p129 = por %p127, %p128
    %p131 = scmp.ne.s32.totalorder %s116, %s130
    %p132 = scmp.eq.s32.totalorder %s22, 0
    %p133 = por %p131, %p132
    %s134 = sadd.s32 %s23, %s24
    %s135 = sadd.s32 %s35, %s31
    %s136 = ssub.s32 %s134, %s135
    %p137 = scmp.eq.s32.totalorder %s136, 0
    %s139 = sadd.s32 %s138, 1
    %s140 = scalar_select %p137, %s138, %s139
    %p143 = pneg %p137
    %p144 = scmp.eq.s32.totalorder %s16, 1
    %p145 = por %p143, %p144
    %p146 = scmp.ne.s32.totalorder %s138, %s141
    %p147 = scmp.eq.s32.totalorder %s16, 0
    %p148 = por %p146, %p147
    %p149 = scmp.ne.s32.totalorder %s138, %s141
    %p150 = scmp.eq.s32.totalorder %s21, 1
    %p151 = por %p149, %p150
    %p152 = scmp.ne.s32.totalorder %s141, %s142
    %p153 = scmp.eq.s32.totalorder %s21, 0
    %p154 = por %p152, %p153
    %p155 = scmp.ne.s32.totalorder %s141, %s142
    %p156 = scmp.eq.s32.totalorder %s22, 1
    %p157 = por %p155, %p156
    %p159 = scmp.ne.s32.totalorder %s142, %s158
    %p160 = scmp.eq.s32.totalorder %s22, 0
    %p161 = por %p159, %p160
    %s162 = sadd.s32 %s23, %s24
    %s163 = sadd.s32 %s35, %s31
    %s164 = ssub.s32 %s162, %s163
    %p165 = scmp.eq.s32.totalorder %s164, 0
    %s167 = sadd.s32 %s166, 1
    %s168 = scalar_select %p165, %s166, %s167
    %p171 = pneg %p165
    %p172 = scmp.eq.s32.totalorder %s16, 1
    %p173 = por %p171, %p172
    %p174 = scmp.ne.s32.totalorder %s166, %s169
    %p175 = scmp.eq.s32.totalorder %s16, 0
    %p176 = por %p174, %p175
    %p177 = scmp.ne.s32.totalorder %s166, %s169
    %p178 = scmp.eq.s32.totalorder %s21, 1
    %p179 = por %p177, %p178
    %p180 = scmp.ne.s32.totalorder %s169, %s170
    %p181 = scmp.eq.s32.totalorder %s21, 0
    %p182 = por %p180, %p181
    %p183 = scmp.ne.s32.totalorder %s169, %s170
    %p184 = scmp.eq.s32.totalorder %s22, 1
    %p185 = por %p183, %p184
    %p187 = scmp.ne.s32.totalorder %s170, %s186
    %p188 = scmp.eq.s32.totalorder %s22, 0
    %p189 = por %p187, %p188
    %s190 = ssub.s32 %s23, %s35
    %p191 = scmp.eq.s32.totalorder %s190, 0
    %s193 = sadd.s32 %s192, 1
    %s194 = scalar_select %p191, %s192, %s193
    %p197 = pneg %p191
    %p198 = scmp.eq.s32.totalorder %s16, 1
    %p199 = por %p197, %p198
    %p200 = scmp.ne.s32.totalorder %s192, %s195
    %p201 = scmp.eq.s32.totalorder %s16, 0
    %p202 = por %p200, %p201
    %p203 = scmp.ne.s32.totalorder %s192, %s195
    %p204 = scmp.eq.s32.totalorder %s21, 1
    %p205 = por %p203, %p204
    %p206 = scmp.ne.s32.totalorder %s195, %s196
    %p207 = scmp.eq.s32.totalorder %s21, 0
    %p208 = por %p206, %p207
    %p209 = scmp.ne.s32.totalorder %s195, %s196
    %p210 = scmp.eq.s32.totalorder %s22, 1
    %p211 = por %p209, %p210
    %p213 = scmp.ne.s32.totalorder %s196, %s212
    %p214 = scmp.eq.s32.totalorder %s22, 0
    %p215 = por %p213, %p214
    %s216 = ssub.s32 %s23, %s35
    %p217 = scmp.eq.s32.totalorder %s216, 0
    %s219 = sadd.s32 %s218, 1
    %s220 = scalar_select %p217, %s218, %s219
    %p223 = pneg %p217
    %p224 = scmp.eq.s32.totalorder %s16, 1
    %p225 = por %p223, %p224
    %p226 = scmp.ne.s32.totalorder %s218, %s221
    %p227 = scmp.eq.s32.totalorder %s16, 0
    %p228 = por %p226, %p227
    %p229 = scmp.ne.s32.totalorder %s218, %s221
    %p230 = scmp.eq.s32.totalorder %s21, 1
    %p231 = por %p229, %p230
    %p232 = scmp.ne.s32.totalorder %s221, %s222
    %p233 = scmp.eq.s32.totalorder %s21, 0
    %p234 = por %p232, %p233
    %p235 = scmp.ne.s32.totalorder %s221, %s222
    %p236 = scmp.eq.s32.totalorder %s22, 1
    %p237 = por %p235, %p236
    %p239 = scmp.ne.s32.totalorder %s222, %s238
    %p240 = scmp.eq.s32.totalorder %s22, 0
    %p241 = por %p239, %p240
    %s242 = ssub.s32 %s23, %s35
    %p243 = scmp.eq.s32.totalorder %s242, 0
    %s245 = sadd.s32 %s244, 1
    %s246 = scalar_select %p243, %s244, %s245
    %p249 = pneg %p243
    %p250 = scmp.eq.s32.totalorder %s16, 1
    %p251 = por %p249, %p250
    %p252 = scmp.ne.s32.totalorder %s244, %s247
    %p253 = scmp.eq.s32.totalorder %s16, 0
    %p254 = por %p252, %p253
    %p255 = scmp.ne.s32.totalorder %s244, %s247
    %p256 = scmp.eq.s32.totalorder %s21, 1
    %p257 = por %p255, %p256
    %p258 = scmp.ne.s32.totalorder %s247, %s248
    %p259 = scmp.eq.s32.totalorder %s21, 0
    %p260 = por %p258, %p259
    %p261 = scmp.ne.s32.totalorder %s247, %s248
    %p262 = scmp.eq.s32.totalorder %s22, 1
    %p263 = por %p261, %p262
    %p265 = scmp.ne.s32.totalorder %s248, %s264
    %p266 = scmp.eq.s32.totalorder %s22, 0
    %p267 = por %p265, %p266
    %s268 = ssub.s32 %s23, %s35
    %p269 = scmp.eq.s32.totalorder %s268, 0
    %s271 = sadd.s32 %s270, 1
    %s272 = scalar_select %p269, %s270, %s271
    %p275 = pneg %p269
    %p276 = scmp.eq.s32.totalorder %s16, 1
    %p277 = por %p275, %p276
    %p278 = scmp.ne.s32.totalorder %s270, %s273
    %p279 = scmp.eq.s32.totalorder %s16, 0
    %p280 = por %p278, %p279
    %p281 = scmp.ne.s32.totalorder %s270, %s273
    %p282 = scmp.eq.s32.totalorder %s21, 1
    %p283 = por %p281, %p282
    %p284 = scmp.ne.s32.totalorder %s273, %s274
    %p285 = scmp.eq.s32.totalorder %s21, 0
    %p286 = por %p284, %p285
    %p287 = scmp.ne.s32.totalorder %s273, %s274
    %p288 = scmp.eq.s32.totalorder %s22, 1
    %p289 = por %p287, %p288
    %p291 = scmp.ne.s32.totalorder %s274, %s290
    %p292 = scmp.eq.s32.totalorder %s22, 0
    %p293 = por %p291, %p292
    %p294 = scmp.le.s32.totalorder 1, %s16
    %p295 = scmp.lt.s32.totalorder %s16, 3
    %p296 = pnand %p294, %p295
    %p297 = pneg %p296
    // Predicated region
    $region9: #{fwd.6} parent=5 // pred_check
      _
    $region10: #{fwd.6} parent=5 // pred_check_branch
      %299 = sbr.rel (%p296) target = $region12
    $region11: #{fwd.6} parent=5 // pred_region
      %s300 = ssub.s32 %s16, 1
      // Predicated region
      $region13: #{fwd.6} parent=11 // pred_check
        %p301 = pneg %p105
      $region14: #{fwd.6} parent=11 // pred_check_branch
        %303 = sbr.rel (%p301) target = $region16
      $region15: #{fwd.6} parent=11 // pred_region
        _
      $region16: #{fwd.6} parent=11 // pred_fallthru
        _
      // Predicated region
      $region17: #{fwd.6} parent=11 // pred_check
        %p304 = pneg %p126
      $region18: #{fwd.6} parent=11 // pred_check_branch
        %306 = sbr.rel (%p304) target = $region20
      $region19: #{fwd.6} parent=11 // pred_region
        _
      $region20: #{fwd.6} parent=11 // pred_fallthru
        _
    $region12: #{fwd.6} parent=5 // pred_fallthru
      _
    %p307 = scmp.lt.s32.totalorder %s16, 2
    // Predicated region
    $region21: #{fwd.6} parent=5 // pred_check
      %p308 = pneg %p307
    $region22: #{fwd.6} parent=5 // pred_check_branch
      %310 = sbr.rel (%p308) target = $region24
    $region23: #{fwd.6} parent=5 // pred_region
      // Predicated region
      $region25: #{fwd.6} parent=23 // pred_check
        %p311 = pneg %p50
      $region26: #{fwd.6} parent=23 // pred_check_branch
        %313 = sbr.rel (%p311) target = $region28
      $region27: #{fwd.6} parent=23 // pred_region
        %s314 = sadd.s32 %s23, %s24
        %s315 = smul.u32 8, %s314
        %p316 = scmp.lt.s32.totalorder %s315, 15
        %s317 = scalar_select %p316, %s315, 15
        %s318 = smul.addr %s317, 4
        %s319 = scalar_lea.vmem %s0, %s318
        %s320 = sadd.s32 %s23, %s24
        %s321 = smul.u32 8, %s320
      $region28: #{fwd.6} parent=23 // pred_fallthru
        _
      // Predicated region
      $region29: #{fwd.6} parent=23 // pred_check
        %p322 = pneg %p78
      $region30: #{fwd.6} parent=23 // pred_check_branch
        %324 = sbr.rel (%p322) target = $region32
      $region31: #{fwd.6} parent=23 // pred_region
        %s325 = sadd.s32 %s23, %s24
        %s326 = smul.u32 8, %s325
        %p327 = scmp.lt.s32.totalorder %s326, 15
        %s328 = scalar_select %p327, %s326, 15
        %s329 = smul.addr %s328, 4
        %s330 = scalar_lea.vmem %s1, %s329
        %s331 = sadd.s32 %s23, %s24
        %s332 = smul.u32 8, %s331
      $region32: #{fwd.6} parent=23 // pred_fallthru
        _
    $region24: #{fwd.6} parent=5 // pred_fallthru
      _
    %p333 = scmp.le.s32.totalorder 1, %s16
    %p334 = scmp.lt.s32.totalorder %s16, 3
    %p335 = pnand %p333, %p334
    %p336 = pneg %p335
    // Predicated region
    $region33: #{fwd.6} parent=5 // pred_check
      _
    $region34: #{fwd.6} parent=5 // pred_check_branch
      %338 = sbr.rel (%p335) target = $region36
    $region35: #{fwd.6} parent=5 // pred_region
      %s339 = ssub.s32 %s16, 1
      %s340 = sadd.s32 %s25, %s26
      %s341 = smul.u32 8, %s340
      %p342 = scmp.lt.s32.totalorder %s341, 15
      %s343 = scalar_select %p342, %s341, 15
      %s344 = smul.addr %s343, 4
      %s345 = scalar_lea.vmem %s0, %s344
      %p346 = pneg %p56
      %p347 = pneg %p53
      %s348 = sadd.s32 %s25, %s26
      %s349 = smul.u32 8, %s348
      %p350 = scmp.lt.s32.totalorder %s349, 15
      %s351 = scalar_select %p350, %s349, 15
      %s352 = smul.addr %s351, 4
      %s353 = scalar_lea.vmem %s1, %s352
      %p354 = pneg %p84
      %p355 = pneg %p81
      %p356 = pneg %p105
      %p357 = pneg %p102
      %p358 = pneg %p126
      %p359 = pneg %p123
      %p360 = pneg %p154
      %p361 = pneg %p151
      %s362 = sadd.s32 %s25, %s26
      %s363 = smul.u32 8, %s362
      %p364 = scmp.lt.s32.totalorder %s363, 15
      %s365 = scalar_select %p364, %s363, 15
      %s366 = smul.addr %s365, 4
      %s367 = scalar_lea.vmem %s4, %s366
      %p368 = pneg %p182
      %p369 = pneg %p179
      %s370 = sadd.s32 %s25, %s26
      %s371 = smul.u32 8, %s370
      %p372 = scmp.lt.s32.totalorder %s371, 15
      %s373 = scalar_select %p372, %s371, 15
      %s374 = smul.addr %s373, 4
      %s375 = scalar_lea.vmem %s5, %s374
      %p376 = pneg %p208
      %p377 = pneg %p205
      %p378 = scmp.lt.s32.totalorder %s25, 1
      %s379 = scalar_select %p378, %s25, 1
      %s380 = scalar_lea.vmem %s6, %s379
      %p381 = pneg %p234
      %p382 = pneg %p231
      %p383 = scmp.lt.s32.totalorder %s25, 1
      %s384 = scalar_select %p383, %s25, 1
      %s385 = scalar_lea.vmem %s7, %s384
      %p386 = pneg %p260
      %p387 = pneg %p257
      %p388 = scmp.lt.s32.totalorder %s25, 1
      %s389 = scalar_select %p388, %s25, 1
      %s390 = scalar_lea.vmem %s8, %s389
      %p391 = pneg %p286
      %p392 = pneg %p283
      %p393 = scmp.lt.s32.totalorder %s25, 1
      %s394 = scalar_select %p393, %s25, 1
      %s395 = scalar_lea.vmem %s9, %s394
      %s396 = sadd.s32 %s25, %s26
      %s397 = smul.u32 8, %s396
      %p398 = scmp.lt.s32.totalorder %s397, 15
      %s399 = scalar_select %p398, %s397, 15
      %s400 = smul.addr %s399, 4
      %s401 = scalar_lea.vmem %s0, %s400
      %s402 = sadd.s32 %s25, %s26
      %s403 = smul.u32 8, %s402
      %s404 = sadd.s32 %s25, %s26
      %s405 = smul.u32 8, %s404
      %p406 = scmp.lt.s32.totalorder %s405, 15
      %s407 = scalar_select %p406, %s405, 15
      %s408 = smul.addr %s407, 4
      %s409 = scalar_lea.vmem %s1, %s408
      %s410 = sadd.s32 %s25, %s26
      %s411 = smul.u32 8, %s410
      %s412 = sadd.s32 %s25, %s26
      %s413 = smul.u32 8, %s412
      %p414 = scmp.lt.s32.totalorder %s413, 15
      %s415 = scalar_select %p414, %s413, 15
      %s416 = smul.addr %s415, 4
      %s417 = scalar_lea.vmem %s4, %s416
      %s418 = sadd.s32 %s25, %s26
      %s419 = smul.u32 8, %s418
      %s420 = sadd.s32 %s25, %s26
      %s421 = smul.u32 8, %s420
      %p422 = scmp.lt.s32.totalorder %s421, 15
      %s423 = scalar_select %p422, %s421, 15
      %s424 = smul.addr %s423, 4
      %s425 = scalar_lea.vmem %s5, %s424
      %s426 = sadd.s32 %s25, %s26
      %s427 = smul.u32 8, %s426
      %p428 = scmp.lt.s32.totalorder %s25, 1
      %s429 = scalar_select %p428, %s25, 1
      %s430 = scalar_lea.vmem %s6, %s429
      %p431 = scmp.lt.s32.totalorder %s25, 1
      %s432 = scalar_select %p431, %s25, 1
      %s433 = scalar_lea.vmem %s7, %s432
      %p434 = scmp.lt.s32.totalorder %s25, 1
      %s435 = scalar_select %p434, %s25, 1
      %s436 = scalar_lea.vmem %s8, %s435
      %p437 = scmp.lt.s32.totalorder %s25, 1
      %s438 = scalar_select %p437, %s25, 1
      %s439 = scalar_lea.vmem %s9, %s438
      %v441 = vld [vmem:[%s401] sm:$0xf]
      %v442 = vld [vmem:[%s401 + $0x4] sm:$0xf]
      %v443 = vld [vmem:[%s401 + $0x8] sm:$0xf]
      %v444 = vld [vmem:[%s401 + $0xc] sm:$0xf]
      %v445 = vld [vmem:[%s401 + $0x10] sm:$0xf]
      %v446 = vld [vmem:[%s401 + $0x14] sm:$0xf]
      %v447 = vld [vmem:[%s401 + $0x18] sm:$0xf]
      %v448 = vld [vmem:[%s401 + $0x1c] sm:$0xf]
      %v449 = vld [vmem:[%s2] sm:$0xf]
      %v450 = vld [vmem:[%s2 + $0x4] sm:$0xf]
      %v451 = vld [vmem:[%s2 + $0x8] sm:$0xf]
      %v452 = vld [vmem:[%s2 + $0xc] sm:$0xf]
      %v453 = vld [vmem:[%s2 + $0x10] sm:$0xf]
      %v454 = vld [vmem:[%s2 + $0x14] sm:$0xf]
      %v455 = vld [vmem:[%s2 + $0x18] sm:$0xf]
      %v456 = vld [vmem:[%s2 + $0x1c] sm:$0xf]
      %v457 = vld [vmem:[%s2 + $0x20] sm:$0xf]
      %v458 = vld [vmem:[%s2 + $0x24] sm:$0xf]
      %v459 = vld [vmem:[%s2 + $0x28] sm:$0xf]
      %v460 = vld [vmem:[%s2 + $0x2c] sm:$0xf]
      %v461 = vld [vmem:[%s2 + $0x30] sm:$0xf]
      %v462 = vld [vmem:[%s2 + $0x34] sm:$0xf]
      %v463 = vld [vmem:[%s2 + $0x38] sm:$0xf]
      %v464 = vld [vmem:[%s2 + $0x3c] sm:$0xf]
      %v473 = vunpack.c.l.b16 %v441
      %v474 = vunpack.c.l.b16 %v442
      %v475 = vunpack.c.l.b16 %v443
      %v476 = vunpack.c.l.b16 %v444
      %v477 = vunpack.c.l.b16 %v445
      %v478 = vunpack.c.l.b16 %v446
      %v479 = vunpack.c.l.b16 %v447
      %v480 = vunpack.c.l.b16 %v448
      %v481 = vpack.c.b16 %v474, %v473
      %v482 = vpack.c.b16 %v476, %v475
      %v483 = vpack.c.b16 %v478, %v477
      %v484 = vpack.c.b16 %v480, %v479
      %v505 = vunpack.c.l.b16 %v449
      %v506 = vunpack.c.l.b16 %v450
      %v507 = vunpack.c.l.b16 %v451
      %v508 = vunpack.c.l.b16 %v452
      %v509 = vunpack.c.l.b16 %v453
      %v510 = vunpack.c.l.b16 %v454
      %v511 = vunpack.c.l.b16 %v455
      %v512 = vunpack.c.l.b16 %v456
      %v513 = vunpack.c.l.b16 %v457
      %v514 = vunpack.c.l.b16 %v458
      %v515 = vunpack.c.l.b16 %v459
      %v516 = vunpack.c.l.b16 %v460
      %v517 = vunpack.c.l.b16 %v461
      %v518 = vunpack.c.l.b16 %v462
      %v519 = vunpack.c.l.b16 %v463
      %v520 = vunpack.c.l.b16 %v464
      %v521 = vpack.c.b16 %v506, %v505
      %v522 = vpack.c.b16 %v508, %v507
      %v523 = vpack.c.b16 %v510, %v509
      %v524 = vpack.c.b16 %v512, %v511
      %v525 = vpack.c.b16 %v514, %v513
      %v526 = vpack.c.b16 %v516, %v515
      %v527 = vpack.c.b16 %v518, %v517
      %v528 = vpack.c.b16 %v520, %v519
      %537 = vmatprep.subr.bf16.mxu0 0
      %538 = vmatpush1.bf16.msra.mxu0 %v521
      %539 = vmatprep.subr.bf16.mxu0 0
      %540 = vmatpush1.bf16.msra.mxu0 %v522
      %541 = vmatprep.subr.bf16.mxu0 0
      %542 = vmatpush1.bf16.msra.mxu0 %v523
      %543 = vmatprep.subr.bf16.mxu0 0
      %544 = vmatpush1.bf16.msra.mxu0 %v524
      %545 = vmatprep.subr.bf16.mxu0 0
      %546 = vmatpush1.bf16.msra.mxu0 %v525
      %547 = vmatprep.subr.bf16.mxu0 0
      %548 = vmatpush1.bf16.msra.mxu0 %v526
      %549 = vmatprep.subr.bf16.mxu0 0
      %550 = vmatpush1.bf16.msra.mxu0 %v527
      %551 = vmatprep.subr.bf16.mxu0 0
      %552 = vmatpush1.bf16.msra.mxu0 %v528
      %553 = vmatprep.subr.bf16.mxu0 0
      %554 = vmatpush1.bf16.msra.mxu0 0
      %555 = vmatprep.subr.bf16.mxu0 0
      %556 = vmatpush1.bf16.msra.mxu0 0
      %557 = vmatprep.subr.bf16.mxu0 0
      %558 = vmatpush1.bf16.msra.mxu0 0
      %559 = vmatprep.subr.bf16.mxu0 0
      %560 = vmatpush1.bf16.msra.mxu0 0
      %561 = vmatprep.subr.bf16.mxu0 0
      %562 = vmatpush1.bf16.msra.mxu0 0
      %563 = vmatprep.subr.bf16.mxu0 0
      %564 = vmatpush1.bf16.msra.mxu0 0
      %565 = vmatprep.subr.bf16.mxu0 0
      %566 = vmatpush1.bf16.msra.mxu0 0
      %567 = vmatprep.subr.bf16.mxu0 0
      %568 = vmatpush1.bf16.msra.mxu0 0
      %569 = vmatprep.mubr.bf16.mxu0 0
      %570 = vmatmul.mubr.bf16.gmra.mrb[0].mxu0 %v481
      %v571 = vpop.f32.mrb[0].mxu0
      %v572 = vadd.f32 0.0, %v571
      %v573 = vpop.f32.mrb[0].mxu0
      %v574 = vpop.f32.mrb[0].mxu0
      %v575 = vadd.f32 0.0, %v574
      %v576 = vpop.f32.mrb[0].mxu0
      %577 = vmatprep.mubr.bf16.mxu0 0
      %578 = vmatmul.mubr.bf16.gmra.mrb[0].mxu0 %v482
      %v579 = vpop.f32.mrb[0].mxu0
      %v580 = vadd.f32 0.0, %v579
      %v581 = vpop.f32.mrb[0].mxu0
      %v582 = vpop.f32.mrb[0].mxu0
      %v583 = vadd.f32 0.0, %v582
      %v584 = vpop.f32.mrb[0].mxu0
      %585 = vmatprep.mubr.bf16.mxu0 0
      %586 = vmatmul.mubr.bf16.gmra.mrb[0].mxu0 %v483
      %v587 = vpop.f32.mrb[0].mxu0
      %v588 = vadd.f32 0.0, %v587
      %v589 = vpop.f32.mrb[0].mxu0
      %v590 = vpop.f32.mrb[0].mxu0
      %v591 = vadd.f32 0.0, %v590
      %v592 = vpop.f32.mrb[0].mxu0
      %593 = vmatprep.mubr.bf16.mxu0 0
      %594 = vmatmul.mubr.bf16.gmra.mrb[0].mxu0 %v484
      %v595 = vpop.f32.mrb[0].mxu0
      %v596 = vadd.f32 0.0, %v595
      %v597 = vpop.f32.mrb[0].mxu0
      %v598 = vpop.f32.mrb[0].mxu0
      %v599 = vadd.f32 0.0, %v598
      %v600 = vpop.f32.mrb[0].mxu0
      %601 = vdwg.mxu0
      %v602 = vld [vmem:[%s409] sm:$0xf]
      %v603 = vld [vmem:[%s409 + $0x4] sm:$0xf]
      %v604 = vld [vmem:[%s409 + $0x8] sm:$0xf]
      %v605 = vld [vmem:[%s409 + $0xc] sm:$0xf]
      %v606 = vld [vmem:[%s409 + $0x10] sm:$0xf]
      %v607 = vld [vmem:[%s409 + $0x14] sm:$0xf]
      %v608 = vld [vmem:[%s409 + $0x18] sm:$0xf]
      %v609 = vld [vmem:[%s409 + $0x1c] sm:$0xf]
      %v610 = vld [vmem:[%s3] sm:$0xf]
      %v611 = vld [vmem:[%s3 + $0x4] sm:$0xf]
      %v612 = vld [vmem:[%s3 + $0x8] sm:$0xf]
      %v613 = vld [vmem:[%s3 + $0xc] sm:$0xf]
      %v614 = vld [vmem:[%s3 + $0x10] sm:$0xf]
      %v615 = vld [vmem:[%s3 + $0x14] sm:$0xf]
      %v616 = vld [vmem:[%s3 + $0x18] sm:$0xf]
      %v617 = vld [vmem:[%s3 + $0x1c] sm:$0xf]
      %v618 = vld [vmem:[%s3 + $0x20] sm:$0xf]
      %v619 = vld [vmem:[%s3 + $0x24] sm:$0xf]
      %v620 = vld [vmem:[%s3 + $0x28] sm:$0xf]
      %v621 = vld [vmem:[%s3 + $0x2c] sm:$0xf]
      %v622 = vld [vmem:[%s3 + $0x30] sm:$0xf]
      %v623 = vld [vmem:[%s3 + $0x34] sm:$0xf]
      %v624 = vld [vmem:[%s3 + $0x38] sm:$0xf]
      %v625 = vld [vmem:[%s3 + $0x3c] sm:$0xf]
      %v634 = vunpack.c.l.b16 %v602
      %v635 = vunpack.c.l.b16 %v603
      %v636 = vunpack.c.l.b16 %v604
      %v637 = vunpack.c.l.b16 %v605
      %v638 = vunpack.c.l.b16 %v606
      %v639 = vunpack.c.l.b16 %v607
      %v640 = vunpack.c.l.b16 %v608
      %v641 = vunpack.c.l.b16 %v609
      %v642 = vpack.c.b16 %v635, %v634
      %v643 = vpack.c.b16 %v637, %v636
      %v644 = vpack.c.b16 %v639, %v638
      %v645 = vpack.c.b16 %v641, %v640
      %v666 = vunpack.c.l.b16 %v610
      %v667 = vunpack.c.l.b16 %v611
      %v668 = vunpack.c.l.b16 %v612
      %v669 = vunpack.c.l.b16 %v613
      %v670 = vunpack.c.l.b16 %v614
      %v671 = vunpack.c.l.b16 %v615
      %v672 = vunpack.c.l.b16 %v616
      %v673 = vunpack.c.l.b16 %v617
      %v674 = vunpack.c.l.b16 %v618
      %v675 = vunpack.c.l.b16 %v619
      %v676 = vunpack.c.l.b16 %v620
      %v677 = vunpack.c.l.b16 %v621
      %v678 = vunpack.c.l.b16 %v622
      %v679 = vunpack.c.l.b16 %v623
      %v680 = vunpack.c.l.b16 %v624
      %v681 = vunpack.c.l.b16 %v625
      %v682 = vpack.c.b16 %v667, %v666
      %v683 = vpack.c.b16 %v669, %v668
      %v684 = vpack.c.b16 %v671, %v670
      %v685 = vpack.c.b16 %v673, %v672
      %v686 = vpack.c.b16 %v675, %v674
      %v687 = vpack.c.b16 %v677, %v676
      %v688 = vpack.c.b16 %v679, %v678
      %v689 = vpack.c.b16 %v681, %v680
      %698 = vmatprep.subr.bf16.mxu0 0
      %699 = vmatpush1.bf16.msra.mxu0 %v682
      %700 = vmatprep.subr.bf16.mxu0 0
      %701 = vmatpush1.bf16.msra.mxu0 %v683
      %702 = vmatprep.subr.bf16.mxu0 0
      %703 = vmatpush1.bf16.msra.mxu0 %v684
      %704 = vmatprep.subr.bf16.mxu0 0
      %705 = vmatpush1.bf16.msra.mxu0 %v685
      %706 = vmatprep.subr.bf16.mxu0 0
      %707 = vmatpush1.bf16.msra.mxu0 %v686
      %708 = vmatprep.subr.bf16.mxu0 0
      %709 = vmatpush1.bf16.msra.mxu0 %v687
      %710 = vmatprep.subr.bf16.mxu0 0
      %711 = vmatpush1.bf16.msra.mxu0 %v688
      %712 = vmatprep.subr.bf16.mxu0 0
      %713 = vmatpush1.bf16.msra.mxu0 %v689
      %714 = vmatprep.subr.bf16.mxu0 0
      %715 = vmatpush1.bf16.msra.mxu0 0
      %716 = vmatprep.subr.bf16.mxu0 0
      %717 = vmatpush1.bf16.msra.mxu0 0
      %718 = vmatprep.subr.bf16.mxu0 0
      %719 = vmatpush1.bf16.msra.mxu0 0
      %720 = vmatprep.subr.bf16.mxu0 0
      %721 = vmatpush1.bf16.msra.mxu0 0
      %722 = vmatprep.subr.bf16.mxu0 0
      %723 = vmatpush1.bf16.msra.mxu0 0
      %724 = vmatprep.subr.bf16.mxu0 0
      %725 = vmatpush1.bf16.msra.mxu0 0
      %726 = vmatprep.subr.bf16.mxu0 0
      %727 = vmatpush1.bf16.msra.mxu0 0
      %728 = vmatprep.subr.bf16.mxu0 0
      %729 = vmatpush1.bf16.msra.mxu0 0
      %730 = vmatprep.mubr.bf16.mxu0 0
      %731 = vmatmul.mubr.bf16.gmra.mrb[0].mxu0 %v642
      %v732 = vpop.f32.mrb[0].mxu0
      %v733 = vadd.f32 0.0, %v732
      %v734 = vpop.f32.mrb[0].mxu0
      %v735 = vpop.f32.mrb[0].mxu0
      %v736 = vadd.f32 0.0, %v735
      %v737 = vpop.f32.mrb[0].mxu0
      %738 = vmatprep.mubr.bf16.mxu0 0
      %739 = vmatmul.mubr.bf16.gmra.mrb[0].mxu0 %v643
      %v740 = vpop.f32.mrb[0].mxu0
      %v741 = vadd.f32 0.0, %v740
      %v742 = vpop.f32.mrb[0].mxu0
      %v743 = vpop.f32.mrb[0].mxu0
      %v744 = vadd.f32 0.0, %v743
      %v745 = vpop.f32.mrb[0].mxu0
      %746 = vmatprep.mubr.bf16.mxu0 0
      %747 = vmatmul.mubr.bf16.gmra.mrb[0].mxu0 %v644
      %v748 = vpop.f32.mrb[0].mxu0
      %v749 = vadd.f32 0.0, %v748
      %v750 = vpop.f32.mrb[0].mxu0
      %v751 = vpop.f32.mrb[0].mxu0
      %v752 = vadd.f32 0.0, %v751
      %v753 = vpop.f32.mrb[0].mxu0
      %754 = vmatprep.mubr.bf16.mxu0 0
      %755 = vmatmul.mubr.bf16.gmra.mrb[0].mxu0 %v645
      %v756 = vpop.f32.mrb[0].mxu0
      %v757 = vadd.f32 0.0, %v756
      %v758 = vpop.f32.mrb[0].mxu0
      %v759 = vpop.f32.mrb[0].mxu0
      %v760 = vadd.f32 0.0, %v759
      %v761 = vpop.f32.mrb[0].mxu0
      %762 = vdwg.mxu0
      %v763 = vpack.c.bf16 %v575, %v572
      %v764 = vpack.c.bf16 %v583, %v580
      %v765 = vpack.c.bf16 %v591, %v588
      %v766 = vpack.c.bf16 %v599, %v596
      %v771 = vunpack.c.l.b16 %v763
      %v772 = vunpack.c.h.b16 %v763
      %v773 = vunpack.c.l.b16 %v764
      %v774 = vunpack.c.h.b16 %v764
      %v775 = vunpack.c.l.b16 %v765
      %v776 = vunpack.c.h.b16 %v765
      %v777 = vunpack.c.l.b16 %v766
      %v778 = vunpack.c.h.b16 %v766
      %v779 = vpack.c.b16 %v771, %v771
      %v780 = vpack.c.b16 %v772, %v772
      %v781 = vpack.c.b16 %v773, %v773
      %v782 = vpack.c.b16 %v774, %v774
      %v783 = vpack.c.b16 %v775, %v775
      %v784 = vpack.c.b16 %v776, %v776
      %v785 = vpack.c.b16 %v777, %v777
      %v786 = vpack.c.b16 %v778, %v778
      %795 = vst [vmem:[%s417] sm:$0xf] %v779
      %796 = vst [vmem:[%s417 + $0x4] sm:$0xf] %v780
      %797 = vst [vmem:[%s417 + $0x8] sm:$0xf] %v781
      %798 = vst [vmem:[%s417 + $0xc] sm:$0xf] %v782
      %799 = vst [vmem:[%s417 + $0x10] sm:$0xf] %v783
      %800 = vst [vmem:[%s417 + $0x14] sm:$0xf] %v784
      %801 = vst [vmem:[%s417 + $0x18] sm:$0xf] %v785
      %802 = vst [vmem:[%s417 + $0x1c] sm:$0xf] %v786
      %v803 = vpack.c.bf16 %v736, %v733
      %v804 = vpack.c.bf16 %v744, %v741
      %v805 = vpack.c.bf16 %v752, %v749
      %v806 = vpack.c.bf16 %v760, %v757
      %v811 = vunpack.c.l.b16 %v803
      %v812 = vunpack.c.h.b16 %v803
      %v813 = vunpack.c.l.b16 %v804
      %v814 = vunpack.c.h.b16 %v804
      %v815 = vunpack.c.l.b16 %v805
      %v816 = vunpack.c.h.b16 %v805
      %v817 = vunpack.c.l.b16 %v806
      %v818 = vunpack.c.h.b16 %v806
      %v819 = vpack.c.b16 %v811, %v811
      %v820 = vpack.c.b16 %v812, %v812
      %v821 = vpack.c.b16 %v813, %v813
      %v822 = vpack.c.b16 %v814, %v814
      %v823 = vpack.c.b16 %v815, %v815
      %v824 = vpack.c.b16 %v816, %v816
      %v825 = vpack.c.b16 %v817, %v817
      %v826 = vpack.c.b16 %v818, %v818
      %835 = vst [vmem:[%s425] sm:$0xf] %v819
      %836 = vst [vmem:[%s425 + $0x4] sm:$0xf] %v820
      %837 = vst [vmem:[%s425 + $0x8] sm:$0xf] %v821
      %838 = vst [vmem:[%s425 + $0xc] sm:$0xf] %v822
      %839 = vst [vmem:[%s425 + $0x10] sm:$0xf] %v823
      %840 = vst [vmem:[%s425 + $0x14] sm:$0xf] %v824
      %841 = vst [vmem:[%s425 + $0x18] sm:$0xf] %v825
      %842 = vst [vmem:[%s425 + $0x1c] sm:$0xf] %v826
      %v843 = vadd.f32 %v572, %v575
      %v844 = vadd.f32 %v843, %v580
      %v845 = vadd.f32 %v844, %v583
      %v846 = vadd.f32 %v845, %v588
      %v847 = vadd.f32 %v846, %v591
      %v848 = vadd.f32 %v847, %v596
      %v849 = vadd.f32 %v848, %v599
      %v850 = vrot.slane %v849, 4
      %v851 = vadd.f32 %v849, %v850
      %v852 = vrot.slane %v851, 2
      %v853 = vadd.f32 %v851, %v852
      %v854 = vrot.slane %v853, 1
      %v855 = vadd.f32 %v853, %v854
      %v856 = vmul.f32 %v572, %v572
      %v857 = vmul.f32 %v575, %v575
      %v858 = vmul.f32 %v580, %v580
      %v859 = vmul.f32 %v583, %v583
      %v860 = vmul.f32 %v588, %v588
      %v861 = vmul.f32 %v591, %v591
      %v862 = vmul.f32 %v596, %v596
      %v863 = vmul.f32 %v599, %v599
      %v864 = vadd.f32 %v856, %v857
      %v865 = vadd.f32 %v864, %v858
      %v866 = vadd.f32 %v865, %v859
      %v867 = vadd.f32 %v866, %v860
      %v868 = vadd.f32 %v867, %v861
      %v869 = vadd.f32 %v868, %v862
      %v870 = vadd.f32 %v869, %v863
      %v871 = vrot.slane %v870, 4
      %v872 = vadd.f32 %v870, %v871
      %v873 = vrot.slane %v872, 2
      %v874 = vadd.f32 %v872, %v873
      %v875 = vrot.slane %v874, 1
      %v876 = vadd.f32 %v874, %v875
      %v877 = vadd.f32 %v733, %v736
      %v878 = vadd.f32 %v877, %v741
      %v879 = vadd.f32 %v878, %v744
      %v880 = vadd.f32 %v879, %v749
      %v881 = vadd.f32 %v880, %v752
      %v882 = vadd.f32 %v881, %v757
      %v883 = vadd.f32 %v882, %v760
      %v884 = vrot.slane %v883, 4
      %v885 = vadd.f32 %v883, %v884
      %v886 = vrot.slane %v885, 2
      %v887 = vadd.f32 %v885, %v886
      %v888 = vrot.slane %v887, 1
      %v889 = vadd.f32 %v887, %v888
      %v890 = vmul.f32 %v733, %v733
      %v891 = vmul.f32 %v736, %v736
      %v892 = vmul.f32 %v741, %v741
      %v893 = vmul.f32 %v744, %v744
      %v894 = vmul.f32 %v749, %v749
      %v895 = vmul.f32 %v752, %v752
      %v896 = vmul.f32 %v757, %v757
      %v897 = vmul.f32 %v760, %v760
      %v898 = vadd.f32 %v890, %v891
      %v899 = vadd.f32 %v898, %v892
      %v900 = vadd.f32 %v899, %v893
      %v901 = vadd.f32 %v900, %v894
      %v902 = vadd.f32 %v901, %v895
      %v903 = vadd.f32 %v902, %v896
      %v904 = vadd.f32 %v903, %v897
      %v905 = vrot.slane %v904, 4
      %v906 = vadd.f32 %v904, %v905
      %v907 = vrot.slane %v906, 2
      %v908 = vadd.f32 %v906, %v907
      %v909 = vrot.slane %v908, 1
      %v910 = vadd.f32 %v908, %v909
      %p911 = scmp.eq.s32.totalorder %s26, 0
      // Predicated region
      $region37: #{fwd.6} parent=35 // pred_check
        %p912 = pneg %p911
      $region38: #{fwd.6} parent=35 // pred_check_branch
        %914 = sbr.rel (%p912) target = $region40
      $region39: #{fwd.6} parent=35 // pred_region
        %915 = vst [vmem:[%s430] sm:$0x1] %v855
        %916 = vst [vmem:[%s433] sm:$0x1] %v876
        %917 = vst [vmem:[%s436] sm:$0x1] %v889
        %918 = vst [vmem:[%s439] sm:$0x1] %v910
      $region40: #{fwd.6} parent=35 // pred_fallthru
        _
      %p919 = scmp.ne.s32.totalorder %s26, 0
      // Predicated region
      $region41: #{fwd.6} parent=35 // pred_check
        %p920 = pneg %p919
      $region42: #{fwd.6} parent=35 // pred_check_branch
        %922 = sbr.rel (%p920) target = $region44
      $region43: #{fwd.6} parent=35 // pred_region
        %v923 = vld [vmem:[%s430] sm:$0x1]
        %v924 = vadd.f32 %v923, %v855
        %925 = vst [vmem:[%s430] sm:$0x1] %v924
        %v926 = vld [vmem:[%s433] sm:$0x1]
        %v927 = vadd.f32 %v926, %v876
        %928 = vst [vmem:[%s433] sm:$0x1] %v927
        %v929 = vld [vmem:[%s436] sm:$0x1]
        %v930 = vadd.f32 %v929, %v889
        %931 = vst [vmem:[%s436] sm:$0x1] %v930
        %v932 = vld [vmem:[%s439] sm:$0x1]
        %v933 = vadd.f32 %v932, %v910
        %934 = vst [vmem:[%s439] sm:$0x1] %v933
      $region44: #{fwd.6} parent=35 // pred_fallthru
        _
      %s935 = sadd.s32 %s25, %s26
      %s936 = smul.u32 8, %s935
      %p937 = scmp.lt.s32.totalorder %s936, 15
      %s938 = scalar_select %p937, %s936, 15
      %s939 = smul.addr %s938, 4
      %s940 = scalar_lea.vmem %s4, %s939
      %s941 = sadd.s32 %s25, %s26
      %s942 = smul.u32 8, %s941
      %p943 = scmp.lt.s32.totalorder %s942, 15
      %s944 = scalar_select %p943, %s942, 15
      %s945 = smul.addr %s944, 4
      %s946 = scalar_lea.vmem %s5, %s945
      %p947 = scmp.lt.s32.totalorder %s25, 1
      %s948 = scalar_select %p947, %s25, 1
      %s949 = scalar_lea.vmem %s6, %s948
      %p950 = scmp.lt.s32.totalorder %s25, 1
      %s951 = scalar_select %p950, %s25, 1
      %s952 = scalar_lea.vmem %s7, %s951
      %p953 = scmp.lt.s32.totalorder %s25, 1
      %s954 = scalar_select %p953, %s25, 1
      %s955 = scalar_lea.vmem %s8, %s954
      %p956 = scmp.lt.s32.totalorder %s25, 1
      %s957 = scalar_select %p956, %s25, 1
      %s958 = scalar_lea.vmem %s9, %s957
      // Predicated region
      $region45: #{fwd.6} parent=35 // pred_check
        %p959 = pneg %p151
      $region46: #{fwd.6} parent=35 // pred_check_branch
        %961 = sbr.rel (%p959) target = $region48
      $region47: #{fwd.6} parent=35 // pred_region
        %s962 = sadd.s32 %s25, %s26
        %s963 = smul.u32 8, %s962
      $region48: #{fwd.6} parent=35 // pred_fallthru
        _
      // Predicated region
      $region49: #{fwd.6} parent=35 // pred_check
        %p964 = pneg %p179
      $region50: #{fwd.6} parent=35 // pred_check_branch
        %966 = sbr.rel (%p964) target = $region52
      $region51: #{fwd.6} parent=35 // pred_region
        %s967 = sadd.s32 %s25, %s26
        %s968 = smul.u32 8, %s967
      $region52: #{fwd.6} parent=35 // pred_fallthru
        _
      // Predicated region
      $region53: #{fwd.6} parent=35 // pred_check
        %p969 = pneg %p205
      $region54: #{fwd.6} parent=35 // pred_check_branch
        %971 = sbr.rel (%p969) target = $region56
      $region55: #{fwd.6} parent=35 // pred_region
        _
      $region56: #{fwd.6} parent=35 // pred_fallthru
        _
      // Predicated region
      $region57: #{fwd.6} parent=35 // pred_check
        %p972 = pneg %p231
      $region58: #{fwd.6} parent=35 // pred_check_branch
        %974 = sbr.rel (%p972) target = $region60
      $region59: #{fwd.6} parent=35 // pred_region
        _
      $region60: #{fwd.6} parent=35 // pred_fallthru
        _
      // Predicated region
      $region61: #{fwd.6} parent=35 // pred_check
        %p975 = pneg %p257
      $region62: #{fwd.6} parent=35 // pred_check_branch
        %977 = sbr.rel (%p975) target = $region64
      $region63: #{fwd.6} parent=35 // pred_region
        _
      $region64: #{fwd.6} parent=35 // pred_fallthru
        _
      // Predicated region
      $region65: #{fwd.6} parent=35 // pred_check
        %p978 = pneg %p283
      $region66: #{fwd.6} parent=35 // pred_check_branch
        %980 = sbr.rel (%p978) target = $region68
      $region67: #{fwd.6} parent=35 // pred_region
        _
      $region68: #{fwd.6} parent=35 // pred_fallthru
        _
    $region36: #{fwd.6} parent=5 // pred_fallthru
      _
    %p981 = scmp.le.s32.totalorder 2, %s16
    // Predicated region
    $region69: #{fwd.6} parent=5 // pred_check
      %p982 = pneg %p981
    $region70: #{fwd.6} parent=5 // pred_check_branch
      %984 = sbr.rel (%p982) target = $region72
    $region71: #{fwd.6} parent=5 // pred_region
      %s985 = ssub.s32 %s16, 2
      // Predicated region
      $region73: #{fwd.6} parent=71 // pred_check
        %p986 = pneg %p157
      $region74: #{fwd.6} parent=71 // pred_check_branch
        %988 = sbr.rel (%p986) target = $region76
      $region75: #{fwd.6} parent=71 // pred_region
        %s989 = sadd.s32 %s27, %s28
        %s990 = smul.u32 8, %s989
        %p991 = scmp.lt.s32.totalorder %s990, 15
        %s992 = scalar_select %p991, %s990, 15
        %s993 = smul.addr %s992, 4
        %s994 = scalar_lea.vmem %s4, %s993
      $region76: #{fwd.6} parent=71 // pred_fallthru
        _
      // Predicated region
      $region77: #{fwd.6} parent=71 // pred_check
        %p995 = pneg %p185
      $region78: #{fwd.6} parent=71 // pred_check_branch
        %997 = sbr.rel (%p995) target = $region80
      $region79: #{fwd.6} parent=71 // pred_region
        %s998 = sadd.s32 %s27, %s28
        %s999 = smul.u32 8, %s998
        %p1000 = scmp.lt.s32.totalorder %s999, 15
        %s1001 = scalar_select %p1000, %s999, 15
        %s1002 = smul.addr %s1001, 4
        %s1003 = scalar_lea.vmem %s5, %s1002
      $region80: #{fwd.6} parent=71 // pred_fallthru
        _
      // Predicated region
      $region81: #{fwd.6} parent=71 // pred_check
        %p1004 = pneg %p211
      $region82: #{fwd.6} parent=71 // pred_check_branch
        %1006 = sbr.rel (%p1004) target = $region84
      $region83: #{fwd.6} parent=71 // pred_region
        %p1007 = scmp.lt.s32.totalorder %s27, 1
        %s1008 = scalar_select %p1007, %s27, 1
        %s1009 = scalar_lea.vmem %s6, %s1008
      $region84: #{fwd.6} parent=71 // pred_fallthru
        _
      // Predicated region
      $region85: #{fwd.6} parent=71 // pred_check
        %p1010 = pneg %p237
      $region86: #{fwd.6} parent=71 // pred_check_branch
        %1012 = sbr.rel (%p1010) target = $region88
      $region87: #{fwd.6} parent=71 // pred_region
        %p1013 = scmp.lt.s32.totalorder %s27, 1
        %s1014 = scalar_select %p1013, %s27, 1
        %s1015 = scalar_lea.vmem %s7, %s1014
      $region88: #{fwd.6} parent=71 // pred_fallthru
        _
      // Predicated region
      $region89: #{fwd.6} parent=71 // pred_check
        %p1016 = pneg %p263
      $region90: #{fwd.6} parent=71 // pred_check_branch
        %1018 = sbr.rel (%p1016) target = $region92
      $region91: #{fwd.6} parent=71 // pred_region
        %p1019 = scmp.lt.s32.totalorder %s27, 1
        %s1020 = scalar_select %p1019, %s27, 1
        %s1021 = scalar_lea.vmem %s8, %s1020
      $region92: #{fwd.6} parent=71 // pred_fallthru
        _
      // Predicated region
      $region93: #{fwd.6} parent=71 // pred_check
        %p1022 = pneg %p289
      $region94: #{fwd.6} parent=71 // pred_check_branch
        %1024 = sbr.rel (%p1022) target = $region96
      $region95: #{fwd.6} parent=71 // pred_region
        %p1025 = scmp.lt.s32.totalorder %s27, 1
        %s1026 = scalar_select %p1025, %s27, 1
        %s1027 = scalar_lea.vmem %s9, %s1026
      $region96: #{fwd.6} parent=71 // pred_fallthru
        _
    $region72: #{fwd.6} parent=5 // pred_fallthru
      _
  $region6: #{fwd.6} parent=0 // loop_footer
    %s20 = sadd.s32 1, %s16
  $region7: #{fwd.6} parent=0 // loop_footer_branch
    %15 = sbr.rel target = $region3
  $region8: #{fwd.6} parent=0 // loop_exit
    _

</llo_original>
